<compile_context>
chip_gen: v5e
topology: v5e:2x2
jax: 0.10.0
libtpu: 0.0.40
codegen_flags: <defaults>
</compile_context>

<pallas_src>
import math

import numpy as np
import jax
import jax.numpy as jnp
from jax import lax
from jax.experimental import pallas as pl
from jax.experimental.pallas import tpu as pltpu


# --------------------------- constants / host-side prep ----------------------------
def _make_constants(T, n_embd, n_attn, n_head):
    Dh = n_attn // n_head
    rot = Dh // 2                     # rotary_ndims = int(head_size * 0.5)
    half = rot // 2

    # rotate_half as a lane-permutation matrix (entries 0 / +-1, exact in bf16):
    #   (q @ R)[:, base+j]        = -q[:, base+half+j]   (j <  half)
    #   (q @ R)[:, base+half+j]   =  q[:, base+j]        (j <  half)
    #   pass-through columns      =  0
    R = np.zeros((n_attn, n_attn), np.float32)
    for h in range(n_head):
        base = h * Dh
        for j in range(half):
            R[base + half + j, base + j] = -1.0
            R[base + j, base + half + j] = 1.0

    # cos/sin over (T, n_attn): rotary dims get the usual embedding, pass-through
    # head dims get cos=1 / sin=0 so q*cos + (q@R)*sin is an identity there.
    inv_freq = 1.0 / (10000.0 ** (np.arange(0, rot, 2, dtype=np.float32) / rot))
    tpos = np.arange(T, dtype=np.float32)
    freqs = tpos[:, None] * inv_freq[None, :]                       # (T, rot//2)
    emb = np.concatenate([freqs, freqs], axis=-1)                   # (T, rot)
    cos_h = np.concatenate([np.cos(emb), np.ones((T, Dh - rot), np.float32)], axis=-1)
    sin_h = np.concatenate([np.sin(emb), np.zeros((T, Dh - rot), np.float32)], axis=-1)
    cos_full = np.tile(cos_h, (1, n_head)).astype(np.float32)       # (T, n_attn)
    sin_full = np.tile(sin_h, (1, n_head)).astype(np.float32)       # (T, n_attn)

    # additive causal bias over one batch element (0 allowed / -1e30 masked)
    t_idx = np.arange(T)
    allow = t_idx[None, :] <= t_idx[:, None]
    att_bias = np.where(allow, 0.0, -1e30).astype(np.float32)       # (T, T)

    # time_shift: shift-down-by-one (zero at t=0), expressed as a (T, T) matmul.
    S = np.zeros((T, T), np.float32)
    for r in range(1, T):
        S[r, r - 1] = 1.0
    shift_mask = np.zeros((1, n_embd), np.float32)
    shift_mask[0, :n_embd // 2] = 1.0

    return dict(
        rot_mat=jnp.asarray(R, jnp.bfloat16),
        cos_full=jnp.asarray(cos_full),
        sin_full=jnp.asarray(sin_full),
        att_bias=jnp.asarray(att_bias),
        shift_S=jnp.asarray(S),
        shift_mask=jnp.asarray(shift_mask),
    )


# ----------------------------------- kernel ----------------------------------------
def _build_kernel(n_attn, n_head, time_shift):
    Dh = n_attn // n_head
    scale = 1.0 / math.sqrt(Dh)

    def kernel(*refs):
        if time_shift:
            (x_ref, s_ref, smask_ref, wqkv_ref, bqkv_ref, rot_ref,
             cos_ref, sin_ref, bias_ref, wout_ref, bout_ref, o_ref) = refs
        else:
            (x_ref, wqkv_ref, bqkv_ref, rot_ref,
             cos_ref, sin_ref, bias_ref, wout_ref, bout_ref, o_ref) = refs

        x = x_ref[...]                                              # (T, C) f32
        if time_shift:
            # first half of channels time-shifted by one step (zero at t=0)
            x_sh = jnp.dot(s_ref[...], x, preferred_element_type=jnp.float32)
            m = smask_ref[...]                                      # (1, C)
            x = x * (1.0 - m) + x_sh * m

        # fused Q/K/V projection (bf16 operands, f32 accumulation)
        qkv = (jnp.dot(x.astype(jnp.bfloat16), wqkv_ref[...],
                       preferred_element_type=jnp.float32) + bqkv_ref[...])
        q = qkv[:, :n_attn]
        k = qkv[:, n_attn:2 * n_attn]
        v = qkv[:, 2 * n_attn:]

        # rotary position embedding: q*cos + rotate_half(q)*sin, lane-dense via R
        cosf = cos_ref[...]
        sinf = sin_ref[...]
        rmat = rot_ref[...]
        q = q * cosf + jnp.dot(q.astype(jnp.bfloat16), rmat,
                               preferred_element_type=jnp.float32) * sinf
        k = k * cosf + jnp.dot(k.astype(jnp.bfloat16), rmat,
                               preferred_element_type=jnp.float32) * sinf

        bias = bias_ref[...]                                        # (T, T)
        out_acc = None
        for h in range(n_head):                                     # static unroll
            lo = h * Dh
            hi = lo + Dh
            qh = q[:, lo:hi].astype(jnp.bfloat16)
            kh = k[:, lo:hi].astype(jnp.bfloat16)
            vh = v[:, lo:hi].astype(jnp.bfloat16)
            att = lax.dot_general(qh, kh, (((1,), (1,)), ((), ())),
                                  preferred_element_type=jnp.float32)
            att = att * scale + bias
            att = att - jnp.max(att, axis=-1, keepdims=True)
            e = jnp.exp(att)
            p = e * pl.reciprocal(jnp.sum(e, axis=-1, keepdims=True), approx=True)
            yh = jnp.dot(p.astype(jnp.bfloat16), vh,
                         preferred_element_type=jnp.float32)        # (T, Dh)
            # fold head output straight into the output projection
            contrib = jnp.dot(yh.astype(jnp.bfloat16), wout_ref[lo:hi, :],
                              preferred_element_type=jnp.float32)   # (T, n_embd)
            out_acc = contrib if out_acc is None else out_acc + contrib

        o_ref[...] = out_acc + bout_ref[...]

    return kernel


# ------------------------------ pallas wrapper --------------------------------------
def mha_rotary_pallas(x, params, *, n_head, time_shift=False):
    B, T, C = x.shape
    n_attn = params['wq'].shape[1]
    n_embd_out = params['wout'].shape[1]
    assert n_attn % n_head == 0 and (n_attn // n_head) % 4 == 0

    consts = _make_constants(T, C, n_attn, n_head)

    wqkv = jnp.concatenate([params['wq'], params['wk'], params['wv']],
                           axis=1).astype(jnp.bfloat16)
    bqkv = jnp.concatenate([params['bq'], params['bk'], params['bv']],
                           axis=0).reshape(1, 3 * n_attn)
    wout = params['wout'].astype(jnp.bfloat16)
    bout = params['bout'].reshape(1, n_embd_out)

    inputs = [x]
    in_specs = [pl.BlockSpec((None, T, C), lambda b: (b, 0, 0))]
    if time_shift:
        inputs += [consts['shift_S'], consts['shift_mask']]
    inputs += [wqkv, bqkv, consts['rot_mat'], consts['cos_full'],
               consts['sin_full'], consts['att_bias'], wout, bout]

    # weights / constants: full blocks, constant index -> stay VMEM-resident
    for a in inputs[1:]:
        nd = a.ndim
        in_specs.append(pl.BlockSpec(a.shape, lambda b, nd=nd: (0,) * nd))

    out = pl.pallas_call(
        _build_kernel(n_attn, n_head, time_shift),
        out_shape=jax.ShapeDtypeStruct((B, T, n_embd_out), jnp.float32),
        grid=(B,),
        in_specs=in_specs,
        out_specs=pl.BlockSpec((None, T, n_embd_out), lambda b: (b, 0, 0)),
        compiler_params=pltpu.CompilerParams(
            dimension_semantics=("parallel",),
            vmem_limit_bytes=32 * 1024 * 1024),
    )(*inputs)
    return out


# ------------------------- pure-JAX reference (PyTorch semantics) --------------------
def mha_rotary_reference(x, p, *, n_head, time_shift=False):
    B, T, C = x.shape
    n_attn = p['wq'].shape[1]
    Dh = n_attn // n_head
    rot = Dh // 2

    if time_shift:
        half = C // 2
        first = x[:, :, :half]
        shifted = jnp.concatenate([jnp.zeros_like(first[:, :1]), first[:, :-1]], axis=1)
        x = jnp.concatenate([shifted, x[:, :, half:]], axis=-1)

    q = x @ p['wq'] + p['bq']
    k = x @ p['wk'] + p['bk']
    v = x @ p['wv'] + p['bv']

    def split_heads(u):
        return jnp.transpose(u.reshape(B, T, n_head, Dh), (0, 2, 1, 3))
    q, k, v = split_heads(q), split_heads(k), split_heads(v)

    q_r, q_p = q[..., :rot], q[..., rot:]
    k_r, k_p = k[..., :rot], k[..., rot:]
    inv_freq = 1.0 / (10000.0 ** (jnp.arange(0, rot, 2, dtype=jnp.float32) / rot))
    tpos = jnp.arange(T, dtype=jnp.float32)
    emb = jnp.concatenate([tpos[:, None] * inv_freq[None, :]] * 2, axis=-1)   # (T, rot)
    cos, sin = jnp.cos(emb), jnp.sin(emb)

    def rotate_half(u):
        u1, u2 = u[..., :rot // 2], u[..., rot // 2:]
        return jnp.concatenate([-u2, u1], axis=-1)

    q_r = q_r * cos + rotate_half(q_r) * sin
    k_r = k_r * cos + rotate_half(k_r) * sin
    q = jnp.concatenate([q_r, q_p], axis=-1)
    k = jnp.concatenate([k_r, k_p], axis=-1)

    att = jnp.einsum('bhtd,bhsd->bhts', q, k) * (1.0 / math.sqrt(Dh))
    mask = jnp.tril(jnp.ones((T, T), jnp.float32))
    att = jnp.where(mask == 0, -jnp.inf, att)
    att = jax.nn.softmax(att, axis=-1)
    y = jnp.einsum('bhts,bhsd->bhtd', att, v)
    y = jnp.transpose(y, (0, 2, 1, 3)).reshape(B, T, n_attn)
    return y @ p['wout'] + p['bout']


# ---------------------------------- parameters ---------------------------------------
def init_params(key, n_embd, n_attn):
    ks = jax.random.split(key, 8)

    def w(k, shape, scale=0.02):
        return scale * jax.random.normal(k, shape, dtype=jnp.float32)

    return {
        'wq': w(ks[0], (n_embd, n_attn)), 'bq': w(ks[1], (n_attn,)),
        'wk': w(ks[2], (n_embd, n_attn)), 'bk': w(ks[3], (n_attn,)),
        'wv': w(ks[4], (n_embd, n_attn)), 'bv': w(ks[5], (n_attn,)),
        'wout': w(ks[6], (n_attn, n_embd)), 'bout': w(ks[7], (n_embd,)),
    }


# ------------------------------------- main -------------------------------------------
if __name__ == "__main__":
    B, T = 4, 16
    N_EMBD, N_ATTN, N_HEAD = 256, 256, 4
    TIME_SHIFT = True           # exercise the optional nn.ZeroPad2d time-shift branch

    root = jax.random.PRNGKey(0)
    pkey, xkey = jax.random.split(root)
    params = init_params(pkey, N_EMBD, N_ATTN)
    x = jax.random.normal(xkey, (B, T, N_EMBD), dtype=jnp.float32)

    fwd = jax.jit(lambda xx: mha_rotary_pallas(xx, params, n_head=N_HEAD,
                                               time_shift=TIME_SHIFT))
    out = jax.block_until_ready(fwd(x))

    ref = jax.block_until_ready(
        jax.jit(lambda xx: mha_rotary_reference(xx, params, n_head=N_HEAD,
                                                time_shift=TIME_SHIFT))(x))

    assert out.shape == (B, T, N_EMBD)
    assert bool(jnp.all(jnp.isfinite(out)))
    max_err = float(jnp.max(jnp.abs(out - ref)))
    assert bool(jnp.allclose(out, ref, atol=2e-2, rtol=2e-2)), f"max_err={max_err}"
    print("KERNEL_OK")
</pallas_src>

<mosaic_0001>
module attributes {stable_mosaic.version = 11 : i64} {
  func.func @kernel(%arg0: i32, %arg1: memref<1x16x256xf32, #tpu.memory_space<vmem>>, %arg2: memref<16x16xf32, #tpu.memory_space<vmem>>, %arg3: memref<1x256xf32, #tpu.memory_space<vmem>>, %arg4: memref<256x768xbf16, #tpu.memory_space<vmem>>, %arg5: memref<1x768xf32, #tpu.memory_space<vmem>>, %arg6: memref<256x256xbf16, #tpu.memory_space<vmem>>, %arg7: memref<16x256xf32, #tpu.memory_space<vmem>>, %arg8: memref<16x256xf32, #tpu.memory_space<vmem>>, %arg9: memref<16x16xf32, #tpu.memory_space<vmem>>, %arg10: memref<256x256xbf16, #tpu.memory_space<vmem>>, %arg11: memref<1x256xf32, #tpu.memory_space<vmem>>, %arg12: memref<1x16x256xf32, #tpu.memory_space<vmem>>) attributes {dimension_semantics = [#tpu.dimension_semantics<parallel>], iteration_bounds = array<i64: 4>, scalar_prefetch = 0 : i64, scratch_operands = 0 : i64, tpu.core_type = #tpu.core_type<tc>, window_params = [{transform_indices = @transform_0, window_bounds = array<i64: 1, 16, 256>}, {pipeline_mode = #tpu.pipeline_mode<synchronous>, transform_indices = @transform_1, window_bounds = array<i64: 16, 16>}, {pipeline_mode = #tpu.pipeline_mode<synchronous>, transform_indices = @transform_2, window_bounds = array<i64: 1, 256>}, {pipeline_mode = #tpu.pipeline_mode<synchronous>, transform_indices = @transform_3, window_bounds = array<i64: 256, 768>}, {pipeline_mode = #tpu.pipeline_mode<synchronous>, transform_indices = @transform_4, window_bounds = array<i64: 1, 768>}, {pipeline_mode = #tpu.pipeline_mode<synchronous>, transform_indices = @transform_5, window_bounds = array<i64: 256, 256>}, {pipeline_mode = #tpu.pipeline_mode<synchronous>, transform_indices = @transform_6, window_bounds = array<i64: 16, 256>}, {pipeline_mode = #tpu.pipeline_mode<synchronous>, transform_indices = @transform_7, window_bounds = array<i64: 16, 256>}, {pipeline_mode = #tpu.pipeline_mode<synchronous>, transform_indices = @transform_8, window_bounds = array<i64: 16, 16>}, {pipeline_mode = #tpu.pipeline_mode<synchronous>, transform_indices = @transform_9, window_bounds = array<i64: 256, 256>}, {pipeline_mode = #tpu.pipeline_mode<synchronous>, transform_indices = @transform_10, window_bounds = array<i64: 1, 256>}, {transform_indices = @transform_11, window_bounds = array<i64: 1, 16, 256>}]} {
    %c0 = arith.constant 0 : index
    %c0_0 = arith.constant 0 : index
    %c0_1 = arith.constant 0 : index
    %0 = vector.load %arg1[%c0, %c0_0, %c0_1] : memref<1x16x256xf32, #tpu.memory_space<vmem>>, vector<1x16x256xf32>
    %1 = vector.shape_cast %0 : vector<1x16x256xf32> to vector<16x256xf32>
    %c0_2 = arith.constant 0 : index
    %c0_3 = arith.constant 0 : index
    %2 = vector.load %arg2[%c0_2, %c0_3] : memref<16x16xf32, #tpu.memory_space<vmem>>, vector<16x16xf32>
    %cst = arith.constant dense<0.000000e+00> : vector<16x256xf32>
    %3 = tpu.matmul %2, %1, %cst {dimension_numbers = #tpu.dot_dimension_numbers<[1], [0], [0], [1], [0, 0, 1, 1], [], []>} : vector<16x16xf32>, vector<16x256xf32>, vector<16x256xf32> -> vector<16x256xf32>
    %c0_4 = arith.constant 0 : index
    %c0_5 = arith.constant 0 : index
    %4 = vector.load %arg3[%c0_4, %c0_5] : memref<1x256xf32, #tpu.memory_space<vmem>>, vector<1x256xf32>
    %cst_6 = arith.constant 1.000000e+00 : f32
    %5 = vector.broadcast %cst_6 : f32 to vector<1x256xf32>
    %6 = arith.subf %5, %4 : vector<1x256xf32>
    %7 = vector.broadcast %6 : vector<1x256xf32> to vector<16x256xf32>
    %8 = arith.mulf %1, %7 : vector<16x256xf32>
    %9 = vector.broadcast %4 : vector<1x256xf32> to vector<16x256xf32>
    %10 = arith.mulf %3, %9 : vector<16x256xf32>
    %11 = arith.addf %8, %10 : vector<16x256xf32>
    %12 = arith.truncf %11 : vector<16x256xf32> to vector<16x256xbf16>
    %c0_7 = arith.constant 0 : index
    %c0_8 = arith.constant 0 : index
    %13 = vector.load %arg4[%c0_7, %c0_8] : memref<256x768xbf16, #tpu.memory_space<vmem>>, vector<256x768xbf16>
    %cst_9 = arith.constant dense<0.000000e+00> : vector<16x768xf32>
    %14 = tpu.matmul %12, %13, %cst_9 {dimension_numbers = #tpu.dot_dimension_numbers<[1], [0], [0], [1], [0, 0, 1, 1], [], []>} : vector<16x256xbf16>, vector<256x768xbf16>, vector<16x768xf32> -> vector<16x768xf32>
    %c0_10 = arith.constant 0 : index
    %c0_11 = arith.constant 0 : index
    %15 = vector.load %arg5[%c0_10, %c0_11] : memref<1x768xf32, #tpu.memory_space<vmem>>, vector<1x768xf32>
    %16 = vector.broadcast %15 : vector<1x768xf32> to vector<16x768xf32>
    %17 = arith.addf %14, %16 : vector<16x768xf32>
    %18 = vector.extract_strided_slice %17 {offsets = [0, 0], sizes = [16, 256], strides = [1, 1]} : vector<16x768xf32> to vector<16x256xf32>
    %19 = vector.extract_strided_slice %17 {offsets = [0, 256], sizes = [16, 256], strides = [1, 1]} : vector<16x768xf32> to vector<16x256xf32>
    %20 = vector.extract_strided_slice %17 {offsets = [0, 512], sizes = [16, 256], strides = [1, 1]} : vector<16x768xf32> to vector<16x256xf32>
    %c0_12 = arith.constant 0 : index
    %c0_13 = arith.constant 0 : index
    %21 = vector.load %arg7[%c0_12, %c0_13] : memref<16x256xf32, #tpu.memory_space<vmem>>, vector<16x256xf32>
    %c0_14 = arith.constant 0 : index
    %c0_15 = arith.constant 0 : index
    %22 = vector.load %arg8[%c0_14, %c0_15] : memref<16x256xf32, #tpu.memory_space<vmem>>, vector<16x256xf32>
    %c0_16 = arith.constant 0 : index
    %c0_17 = arith.constant 0 : index
    %23 = vector.load %arg6[%c0_16, %c0_17] : memref<256x256xbf16, #tpu.memory_space<vmem>>, vector<256x256xbf16>
    %24 = arith.mulf %18, %21 : vector<16x256xf32>
    %25 = arith.truncf %18 : vector<16x256xf32> to vector<16x256xbf16>
    %cst_18 = arith.constant dense<0.000000e+00> : vector<16x256xf32>
    %26 = tpu.matmul %25, %23, %cst_18 {dimension_numbers = #tpu.dot_dimension_numbers<[1], [0], [0], [1], [0, 0, 1, 1], [], []>} : vector<16x256xbf16>, vector<256x256xbf16>, vector<16x256xf32> -> vector<16x256xf32>
    %27 = arith.mulf %26, %22 : vector<16x256xf32>
    %28 = arith.addf %24, %27 : vector<16x256xf32>
    %29 = arith.mulf %19, %21 : vector<16x256xf32>
    %30 = arith.truncf %19 : vector<16x256xf32> to vector<16x256xbf16>
    %cst_19 = arith.constant dense<0.000000e+00> : vector<16x256xf32>
    %31 = tpu.matmul %30, %23, %cst_19 {dimension_numbers = #tpu.dot_dimension_numbers<[1], [0], [0], [1], [0, 0, 1, 1], [], []>} : vector<16x256xbf16>, vector<256x256xbf16>, vector<16x256xf32> -> vector<16x256xf32>
    %32 = arith.mulf %31, %22 : vector<16x256xf32>
    %33 = arith.addf %29, %32 : vector<16x256xf32>
    %c0_20 = arith.constant 0 : index
    %c0_21 = arith.constant 0 : index
    %34 = vector.load %arg9[%c0_20, %c0_21] : memref<16x16xf32, #tpu.memory_space<vmem>>, vector<16x16xf32>
    %35 = vector.extract_strided_slice %28 {offsets = [0, 0], sizes = [16, 64], strides = [1, 1]} : vector<16x256xf32> to vector<16x64xf32>
    %36 = arith.truncf %35 : vector<16x64xf32> to vector<16x64xbf16>
    %37 = vector.extract_strided_slice %33 {offsets = [0, 0], sizes = [16, 64], strides = [1, 1]} : vector<16x256xf32> to vector<16x64xf32>
    %38 = arith.truncf %37 : vector<16x64xf32> to vector<16x64xbf16>
    %39 = vector.extract_strided_slice %20 {offsets = [0, 0], sizes = [16, 64], strides = [1, 1]} : vector<16x256xf32> to vector<16x64xf32>
    %40 = arith.truncf %39 : vector<16x64xf32> to vector<16x64xbf16>
    %cst_22 = arith.constant dense<0.000000e+00> : vector<16x16xf32>
    %41 = tpu.matmul %36, %38, %cst_22 {dimension_numbers = #tpu.dot_dimension_numbers<[1], [1], [0], [0], [0, 0, 1, 0], [], []>} : vector<16x64xbf16>, vector<16x64xbf16>, vector<16x16xf32> -> vector<16x16xf32>
    %cst_23 = arith.constant 1.250000e-01 : f32
    %42 = vector.broadcast %cst_23 : f32 to vector<16x16xf32>
    %43 = arith.mulf %41, %42 : vector<16x16xf32>
    %44 = arith.addf %43, %34 : vector<16x16xf32>
    %cst_24 = arith.constant dense<0xFF800000> : vector<16xf32>
    %45 = vector.multi_reduction <maximumf>, %44, %cst_24 [1] : vector<16x16xf32> to vector<16xf32>
    %46 = vector.shape_cast %45 : vector<16xf32> to vector<16x1xf32>
    %47 = vector.broadcast %46 : vector<16x1xf32> to vector<16x16xf32>
    %48 = arith.subf %44, %47 : vector<16x16xf32>
    %49 = math.exp %48 : vector<16x16xf32>
    %cst_25 = arith.constant dense<0.000000e+00> : vector<16xf32>
    %50 = vector.multi_reduction <add>, %49, %cst_25 [1] : vector<16x16xf32> to vector<16xf32>
    %51 = vector.shape_cast %50 : vector<16xf32> to vector<16x1xf32>
    %52 = tpu.reciprocal %51 {approx = true} : vector<16x1xf32> -> vector<16x1xf32>
    %53 = vector.broadcast %52 : vector<16x1xf32> to vector<16x16xf32>
    %54 = arith.mulf %49, %53 : vector<16x16xf32>
    %55 = arith.truncf %54 : vector<16x16xf32> to vector<16x16xbf16>
    %cst_26 = arith.constant dense<0.000000e+00> : vector<16x64xf32>
    %56 = tpu.matmul %55, %40, %cst_26 {dimension_numbers = #tpu.dot_dimension_numbers<[1], [0], [0], [1], [0, 0, 1, 1], [], []>} : vector<16x16xbf16>, vector<16x64xbf16>, vector<16x64xf32> -> vector<16x64xf32>
    %57 = arith.truncf %56 : vector<16x64xf32> to vector<16x64xbf16>
    %c0_27 = arith.constant 0 : index
    %c0_28 = arith.constant 0 : index
    %58 = vector.load %arg10[%c0_27, %c0_28] : memref<256x256xbf16, #tpu.memory_space<vmem>>, vector<64x256xbf16>
    %cst_29 = arith.constant dense<0.000000e+00> : vector<16x256xf32>
    %59 = tpu.matmul %57, %58, %cst_29 {dimension_numbers = #tpu.dot_dimension_numbers<[1], [0], [0], [1], [0, 0, 1, 1], [], []>} : vector<16x64xbf16>, vector<64x256xbf16>, vector<16x256xf32> -> vector<16x256xf32>
    %60 = vector.extract_strided_slice %28 {offsets = [0, 64], sizes = [16, 64], strides = [1, 1]} : vector<16x256xf32> to vector<16x64xf32>
    %61 = arith.truncf %60 : vector<16x64xf32> to vector<16x64xbf16>
    %62 = vector.extract_strided_slice %33 {offsets = [0, 64], sizes = [16, 64], strides = [1, 1]} : vector<16x256xf32> to vector<16x64xf32>
    %63 = arith.truncf %62 : vector<16x64xf32> to vector<16x64xbf16>
    %64 = vector.extract_strided_slice %20 {offsets = [0, 64], sizes = [16, 64], strides = [1, 1]} : vector<16x256xf32> to vector<16x64xf32>
    %65 = arith.truncf %64 : vector<16x64xf32> to vector<16x64xbf16>
    %cst_30 = arith.constant dense<0.000000e+00> : vector<16x16xf32>
    %66 = tpu.matmul %61, %63, %cst_30 {dimension_numbers = #tpu.dot_dimension_numbers<[1], [1], [0], [0], [0, 0, 1, 0], [], []>} : vector<16x64xbf16>, vector<16x64xbf16>, vector<16x16xf32> -> vector<16x16xf32>
    %cst_31 = arith.constant 1.250000e-01 : f32
    %67 = vector.broadcast %cst_31 : f32 to vector<16x16xf32>
    %68 = arith.mulf %66, %67 : vector<16x16xf32>
    %69 = arith.addf %68, %34 : vector<16x16xf32>
    %cst_32 = arith.constant dense<0xFF800000> : vector<16xf32>
    %70 = vector.multi_reduction <maximumf>, %69, %cst_32 [1] : vector<16x16xf32> to vector<16xf32>
    %71 = vector.shape_cast %70 : vector<16xf32> to vector<16x1xf32>
    %72 = vector.broadcast %71 : vector<16x1xf32> to vector<16x16xf32>
    %73 = arith.subf %69, %72 : vector<16x16xf32>
    %74 = math.exp %73 : vector<16x16xf32>
    %cst_33 = arith.constant dense<0.000000e+00> : vector<16xf32>
    %75 = vector.multi_reduction <add>, %74, %cst_33 [1] : vector<16x16xf32> to vector<16xf32>
    %76 = vector.shape_cast %75 : vector<16xf32> to vector<16x1xf32>
    %77 = tpu.reciprocal %76 {approx = true} : vector<16x1xf32> -> vector<16x1xf32>
    %78 = vector.broadcast %77 : vector<16x1xf32> to vector<16x16xf32>
    %79 = arith.mulf %74, %78 : vector<16x16xf32>
    %80 = arith.truncf %79 : vector<16x16xf32> to vector<16x16xbf16>
    %cst_34 = arith.constant dense<0.000000e+00> : vector<16x64xf32>
    %81 = tpu.matmul %80, %65, %cst_34 {dimension_numbers = #tpu.dot_dimension_numbers<[1], [0], [0], [1], [0, 0, 1, 1], [], []>} : vector<16x16xbf16>, vector<16x64xbf16>, vector<16x64xf32> -> vector<16x64xf32>
    %82 = arith.truncf %81 : vector<16x64xf32> to vector<16x64xbf16>
    %c64 = arith.constant 64 : index
    %c0_35 = arith.constant 0 : index
    %83 = vector.load %arg10[%c64, %c0_35] : memref<256x256xbf16, #tpu.memory_space<vmem>>, vector<64x256xbf16>
    %cst_36 = arith.constant dense<0.000000e+00> : vector<16x256xf32>
    %84 = tpu.matmul %82, %83, %cst_36 {dimension_numbers = #tpu.dot_dimension_numbers<[1], [0], [0], [1], [0, 0, 1, 1], [], []>} : vector<16x64xbf16>, vector<64x256xbf16>, vector<16x256xf32> -> vector<16x256xf32>
    %85 = arith.addf %59, %84 : vector<16x256xf32>
    %86 = vector.extract_strided_slice %28 {offsets = [0, 128], sizes = [16, 64], strides = [1, 1]} : vector<16x256xf32> to vector<16x64xf32>
    %87 = arith.truncf %86 : vector<16x64xf32> to vector<16x64xbf16>
    %88 = vector.extract_strided_slice %33 {offsets = [0, 128], sizes = [16, 64], strides = [1, 1]} : vector<16x256xf32> to vector<16x64xf32>
    %89 = arith.truncf %88 : vector<16x64xf32> to vector<16x64xbf16>
    %90 = vector.extract_strided_slice %20 {offsets = [0, 128], sizes = [16, 64], strides = [1, 1]} : vector<16x256xf32> to vector<16x64xf32>
    %91 = arith.truncf %90 : vector<16x64xf32> to vector<16x64xbf16>
    %cst_37 = arith.constant dense<0.000000e+00> : vector<16x16xf32>
    %92 = tpu.matmul %87, %89, %cst_37 {dimension_numbers = #tpu.dot_dimension_numbers<[1], [1], [0], [0], [0, 0, 1, 0], [], []>} : vector<16x64xbf16>, vector<16x64xbf16>, vector<16x16xf32> -> vector<16x16xf32>
    %cst_38 = arith.constant 1.250000e-01 : f32
    %93 = vector.broadcast %cst_38 : f32 to vector<16x16xf32>
    %94 = arith.mulf %92, %93 : vector<16x16xf32>
    %95 = arith.addf %94, %34 : vector<16x16xf32>
    %cst_39 = arith.constant dense<0xFF800000> : vector<16xf32>
    %96 = vector.multi_reduction <maximumf>, %95, %cst_39 [1] : vector<16x16xf32> to vector<16xf32>
    %97 = vector.shape_cast %96 : vector<16xf32> to vector<16x1xf32>
    %98 = vector.broadcast %97 : vector<16x1xf32> to vector<16x16xf32>
    %99 = arith.subf %95, %98 : vector<16x16xf32>
    %100 = math.exp %99 : vector<16x16xf32>
    %cst_40 = arith.constant dense<0.000000e+00> : vector<16xf32>
    %101 = vector.multi_reduction <add>, %100, %cst_40 [1] : vector<16x16xf32> to vector<16xf32>
    %102 = vector.shape_cast %101 : vector<16xf32> to vector<16x1xf32>
    %103 = tpu.reciprocal %102 {approx = true} : vector<16x1xf32> -> vector<16x1xf32>
    %104 = vector.broadcast %103 : vector<16x1xf32> to vector<16x16xf32>
    %105 = arith.mulf %100, %104 : vector<16x16xf32>
    %106 = arith.truncf %105 : vector<16x16xf32> to vector<16x16xbf16>
    %cst_41 = arith.constant dense<0.000000e+00> : vector<16x64xf32>
    %107 = tpu.matmul %106, %91, %cst_41 {dimension_numbers = #tpu.dot_dimension_numbers<[1], [0], [0], [1], [0, 0, 1, 1], [], []>} : vector<16x16xbf16>, vector<16x64xbf16>, vector<16x64xf32> -> vector<16x64xf32>
    %108 = arith.truncf %107 : vector<16x64xf32> to vector<16x64xbf16>
    %c128 = arith.constant 128 : index
    %c0_42 = arith.constant 0 : index
    %109 = vector.load %arg10[%c128, %c0_42] : memref<256x256xbf16, #tpu.memory_space<vmem>>, vector<64x256xbf16>
    %cst_43 = arith.constant dense<0.000000e+00> : vector<16x256xf32>
    %110 = tpu.matmul %108, %109, %cst_43 {dimension_numbers = #tpu.dot_dimension_numbers<[1], [0], [0], [1], [0, 0, 1, 1], [], []>} : vector<16x64xbf16>, vector<64x256xbf16>, vector<16x256xf32> -> vector<16x256xf32>
    %111 = arith.addf %85, %110 : vector<16x256xf32>
    %112 = vector.extract_strided_slice %28 {offsets = [0, 192], sizes = [16, 64], strides = [1, 1]} : vector<16x256xf32> to vector<16x64xf32>
    %113 = arith.truncf %112 : vector<16x64xf32> to vector<16x64xbf16>
    %114 = vector.extract_strided_slice %33 {offsets = [0, 192], sizes = [16, 64], strides = [1, 1]} : vector<16x256xf32> to vector<16x64xf32>
    %115 = arith.truncf %114 : vector<16x64xf32> to vector<16x64xbf16>
    %116 = vector.extract_strided_slice %20 {offsets = [0, 192], sizes = [16, 64], strides = [1, 1]} : vector<16x256xf32> to vector<16x64xf32>
    %117 = arith.truncf %116 : vector<16x64xf32> to vector<16x64xbf16>
    %cst_44 = arith.constant dense<0.000000e+00> : vector<16x16xf32>
    %118 = tpu.matmul %113, %115, %cst_44 {dimension_numbers = #tpu.dot_dimension_numbers<[1], [1], [0], [0], [0, 0, 1, 0], [], []>} : vector<16x64xbf16>, vector<16x64xbf16>, vector<16x16xf32> -> vector<16x16xf32>
    %cst_45 = arith.constant 1.250000e-01 : f32
    %119 = vector.broadcast %cst_45 : f32 to vector<16x16xf32>
    %120 = arith.mulf %118, %119 : vector<16x16xf32>
    %121 = arith.addf %120, %34 : vector<16x16xf32>
    %cst_46 = arith.constant dense<0xFF800000> : vector<16xf32>
    %122 = vector.multi_reduction <maximumf>, %121, %cst_46 [1] : vector<16x16xf32> to vector<16xf32>
    %123 = vector.shape_cast %122 : vector<16xf32> to vector<16x1xf32>
    %124 = vector.broadcast %123 : vector<16x1xf32> to vector<16x16xf32>
    %125 = arith.subf %121, %124 : vector<16x16xf32>
    %126 = math.exp %125 : vector<16x16xf32>
    %cst_47 = arith.constant dense<0.000000e+00> : vector<16xf32>
    %127 = vector.multi_reduction <add>, %126, %cst_47 [1] : vector<16x16xf32> to vector<16xf32>
    %128 = vector.shape_cast %127 : vector<16xf32> to vector<16x1xf32>
    %129 = tpu.reciprocal %128 {approx = true} : vector<16x1xf32> -> vector<16x1xf32>
    %130 = vector.broadcast %129 : vector<16x1xf32> to vector<16x16xf32>
    %131 = arith.mulf %126, %130 : vector<16x16xf32>
    %132 = arith.truncf %131 : vector<16x16xf32> to vector<16x16xbf16>
    %cst_48 = arith.constant dense<0.000000e+00> : vector<16x64xf32>
    %133 = tpu.matmul %132, %117, %cst_48 {dimension_numbers = #tpu.dot_dimension_numbers<[1], [0], [0], [1], [0, 0, 1, 1], [], []>} : vector<16x16xbf16>, vector<16x64xbf16>, vector<16x64xf32> -> vector<16x64xf32>
    %134 = arith.truncf %133 : vector<16x64xf32> to vector<16x64xbf16>
    %c192 = arith.constant 192 : index
    %c0_49 = arith.constant 0 : index
    %135 = vector.load %arg10[%c192, %c0_49] : memref<256x256xbf16, #tpu.memory_space<vmem>>, vector<64x256xbf16>
    %cst_50 = arith.constant dense<0.000000e+00> : vector<16x256xf32>
    %136 = tpu.matmul %134, %135, %cst_50 {dimension_numbers = #tpu.dot_dimension_numbers<[1], [0], [0], [1], [0, 0, 1, 1], [], []>} : vector<16x64xbf16>, vector<64x256xbf16>, vector<16x256xf32> -> vector<16x256xf32>
    %137 = arith.addf %111, %136 : vector<16x256xf32>
    %c0_51 = arith.constant 0 : index
    %c0_52 = arith.constant 0 : index
    %138 = vector.load %arg11[%c0_51, %c0_52] : memref<1x256xf32, #tpu.memory_space<vmem>>, vector<1x256xf32>
    %139 = vector.broadcast %138 : vector<1x256xf32> to vector<16x256xf32>
    %140 = arith.addf %137, %139 : vector<16x256xf32>
    %c0_53 = arith.constant 0 : index
    %c0_54 = arith.constant 0 : index
    %c0_55 = arith.constant 0 : index
    %141 = vector.load %arg12[%c0_53, %c0_54, %c0_55] : memref<1x16x256xf32, #tpu.memory_space<vmem>>, vector<1x16x256xf32>
    %142 = vector.shape_cast %141 : vector<1x16x256xf32> to vector<16x256xf32>
    %143 = vector.shape_cast %140 : vector<16x256xf32> to vector<1x16x256xf32>
    tpu.vector_store %arg12[%c0_53, %c0_54, %c0_55], %143 {strides = array<i32>} : memref<1x16x256xf32, #tpu.memory_space<vmem>>, vector<1x16x256xf32>,
    return
  }
  func.func @transform_0(%arg0: i32) -> (i32, i32, i32) {
    %c0_i32 = arith.constant 0 : i32
    %c0_i32_0 = arith.constant 0 : i32
    %c0_i32_1 = arith.constant 0 : i32
    return %arg0, %c0_i32, %c0_i32_0 : i32, i32, i32
  }
  func.func @transform_1(%arg0: i32) -> (i32, i32) {
    %c0_i32 = arith.constant 0 : i32
    %c0_i32_0 = arith.constant 0 : i32
    %c0_i32_1 = arith.constant 0 : i32
    return %c0_i32, %c0_i32_0 : i32, i32
  }
  func.func @transform_2(%arg0: i32) -> (i32, i32) {
    %c0_i32 = arith.constant 0 : i32
    %c0_i32_0 = arith.constant 0 : i32
    %c0_i32_1 = arith.constant 0 : i32
    return %c0_i32, %c0_i32_0 : i32, i32
  }
  func.func @transform_3(%arg0: i32) -> (i32, i32) {
    %c0_i32 = arith.constant 0 : i32
    %c0_i32_0 = arith.constant 0 : i32
    %c0_i32_1 = arith.constant 0 : i32
    return %c0_i32, %c0_i32_0 : i32, i32
  }
  func.func @transform_4(%arg0: i32) -> (i32, i32) {
    %c0_i32 = arith.constant 0 : i32
    %c0_i32_0 = arith.constant 0 : i32
    %c0_i32_1 = arith.constant 0 : i32
    return %c0_i32, %c0_i32_0 : i32, i32
  }
  func.func @transform_5(%arg0: i32) -> (i32, i32) {
    %c0_i32 = arith.constant 0 : i32
    %c0_i32_0 = arith.constant 0 : i32
    %c0_i32_1 = arith.constant 0 : i32
    return %c0_i32, %c0_i32_0 : i32, i32
  }
  func.func @transform_6(%arg0: i32) -> (i32, i32) {
    %c0_i32 = arith.constant 0 : i32
    %c0_i32_0 = arith.constant 0 : i32
    %c0_i32_1 = arith.constant 0 : i32
    return %c0_i32, %c0_i32_0 : i32, i32
  }
  func.func @transform_7(%arg0: i32) -> (i32, i32) {
    %c0_i32 = arith.constant 0 : i32
    %c0_i32_0 = arith.constant 0 : i32
    %c0_i32_1 = arith.constant 0 : i32
    return %c0_i32, %c0_i32_0 : i32, i32
  }
  func.func @transform_8(%arg0: i32) -> (i32, i32) {
    %c0_i32 = arith.constant 0 : i32
    %c0_i32_0 = arith.constant 0 : i32
    %c0_i32_1 = arith.constant 0 : i32
    return %c0_i32, %c0_i32_0 : i32, i32
  }
  func.func @transform_9(%arg0: i32) -> (i32, i32) {
    %c0_i32 = arith.constant 0 : i32
    %c0_i32_0 = arith.constant 0 : i32
    %c0_i32_1 = arith.constant 0 : i32
    return %c0_i32, %c0_i32_0 : i32, i32
  }
  func.func @transform_10(%arg0: i32) -> (i32, i32) {
    %c0_i32 = arith.constant 0 : i32
    %c0_i32_0 = arith.constant 0 : i32
    %c0_i32_1 = arith.constant 0 : i32
    return %c0_i32, %c0_i32_0 : i32, i32
  }
  func.func @transform_11(%arg0: i32) -> (i32, i32, i32) {
    %c0_i32 = arith.constant 0 : i32
    %c0_i32_0 = arith.constant 0 : i32
    %c0_i32_1 = arith.constant 0 : i32
    return %arg0, %c0_i32, %c0_i32_0 : i32, i32, i32
  }
}

</mosaic_0001>

<llo_original>
// kernel: _lambda_.1
$region0: #{_lambda_.1}
  #allocation0 [shape = 'u32[]', space=smem, size = 0x4, offset = 0x4, fixed_abs, tag = 'smem constant byte address 0x4 - core index']
  #allocation1 [shape = 'u32[72,128]{1,0:T(1,128)}', space=vmem, size = 0x9000, scoped, tag = 'internal scratch']
  %s0 = inlined_call_operand.hbm [shape: f32[4,16,256], index: 0, kind: input, shape index: {}]
  %s1 = inlined_call_operand.hbm [shape: f32[16,16], index: 1, kind: input, shape index: {}]
  %s2 = inlined_call_operand.vmem [shape: f32[1,256], index: 2, kind: input, shape index: {}]
  %s3 = inlined_call_operand.hbm [shape: bf16[256,768], index: 3, kind: input, shape index: {}]
  %s4 = inlined_call_operand.hbm [shape: f32[1,768], index: 4, kind: input, shape index: {}]
  %s5 = inlined_call_operand.hbm [shape: bf16[256,256], index: 5, kind: input, shape index: {}]
  %s6 = inlined_call_operand.hbm [shape: f32[16,256], index: 6, kind: input, shape index: {}]
  %s7 = inlined_call_operand.hbm [shape: f32[16,256], index: 7, kind: input, shape index: {}]
  %s8 = inlined_call_operand.hbm [shape: f32[16,16], index: 8, kind: input, shape index: {}]
  %s9 = inlined_call_operand.hbm [shape: bf16[256,256], index: 9, kind: input, shape index: {}]
  %s10 = inlined_call_operand.hbm [shape: f32[1,256], index: 10, kind: input, shape index: {}]
  %s11 = inlined_call_operand.hbm [shape: f32[4,16,256], index: 11, kind: output, shape index: {}]
  %s12 = sld [smem:[#allocation0]]
  $region117: #{_lambda_.1} parent=0
    _
  %s14 = ssub.s32 1, %s12
  %s15 = scalar_select 0, %s14, %s12
  $region1: #{_lambda_.1} parent=0
    #allocation2 [shape = 'u8[32768]{0}', space=vmem, size = 0x8000, scoped, tag = 'input window, operand 0']
    #allocation3 [shape = 's32[2]{0}', space=sflag, size = 0x8, scoped, tag = 'scoped memory for _lambda_.1']
    #allocation4 [shape = 's32[2]{0}', space=sflag, size = 0x8, scoped, tag = 'scoped memory for _lambda_.1']
    #allocation5 [shape = 'u8[8192]{0}', space=vmem, size = 0x2000, scoped, tag = 'input window, operand 1, single buffered']
    #allocation6 [shape = 's32[1]{0}', space=sflag, size = 0x4, scoped, tag = 'scoped memory for _lambda_.1']
    #allocation7 [shape = 'u8[393216]{0}', space=vmem, size = 0x60000, scoped, tag = 'input window, operand 3, single buffered']
    #allocation8 [shape = 'u8[3072]{0}', space=vmem, size = 0xc00, scoped, tag = 'input window, operand 4, single buffered']
    #allocation9 [shape = 's32[1]{0}', space=sflag, size = 0x4, scoped, tag = 'scoped memory for _lambda_.1']
    #allocation10 [shape = 'u8[131072]{0}', space=vmem, size = 0x20000, scoped, tag = 'input window, operand 5, single buffered']
    #allocation11 [shape = 'u8[16384]{0}', space=vmem, size = 0x4000, scoped, tag = 'input window, operand 6, single buffered']
    #allocation12 [shape = 's32[1]{0}', space=sflag, size = 0x4, scoped, tag = 'scoped memory for _lambda_.1']
    #allocation13 [shape = 'u8[16384]{0}', space=vmem, size = 0x4000, scoped, tag = 'input window, operand 7, single buffered']
    #allocation14 [shape = 'u8[8192]{0}', space=vmem, size = 0x2000, scoped, tag = 'input window, operand 8, single buffered']
    #allocation15 [shape = 's32[1]{0}', space=sflag, size = 0x4, scoped, tag = 'scoped memory for _lambda_.1']
    #allocation16 [shape = 'u8[131072]{0}', space=vmem, size = 0x20000, scoped, tag = 'input window, operand 9, single buffered']
    #allocation17 [shape = 'u8[1024]{0}', space=vmem, size = 0x400, scoped, tag = 'input window, operand 10, single buffered']
    #allocation18 [shape = 's32[1]{0}', space=sflag, size = 0x4, scoped, tag = 'scoped memory for _lambda_.1']
    #allocation19 [shape = 'u8[32768]{0}', space=vmem, size = 0x8000, scoped, tag = 'output window, operand 0']
    %16 = vsyncpa [#allocation3], 0
    %s17 = scalar_lea.sflag [#allocation3], 1
    %18 = vsyncpa %s17, 0
    %19 = vsyncpa [#allocation6], 0
    %20 = vsyncpa [#allocation9], 0
    %21 = vsyncpa [#allocation12], 0
    %22 = vsyncpa [#allocation15], 0
    %23 = vsyncpa [#allocation18], 0
    %24 = vsyncpa [#allocation4], 0
    %s25 = scalar_lea.sflag [#allocation4], 1
    %26 = vsyncpa %s25, 0
    loop: start=0, step=1, limit=6
    $region2: #{_lambda_.1} parent=1 // loop_pre_header
      _
    $region3: #{_lambda_.1} parent=1 // loop_header
      %s28 = sphi 0, %s32
      %p29 = scmp.ge.s32.totalorder %s28, 6
      %s38 = sphi 0, %s40
      %s41 = sphi 0, %s38
      %s42 = sphi 0, %s41
      %s58 = sphi 0, %s42
      %s62 = sphi 0, %s62
      %s64 = sphi 0, %s62
      %s65 = sphi 0, %s64
      %s79 = sphi 0, %s65
      %s83 = sphi 0, %s83
      %s85 = sphi 0, %s83
      %s86 = sphi 0, %s85
      %s100 = sphi 0, %s86
      %s104 = sphi 0, %s104
      %s106 = sphi 0, %s104
      %s107 = sphi 0, %s106
      %s121 = sphi 0, %s107
      %s125 = sphi 0, %s125
      %s127 = sphi 0, %s125
      %s128 = sphi 0, %s127
      %s142 = sphi 0, %s128
      %s146 = sphi 0, %s146
      %s148 = sphi 0, %s146
      %s149 = sphi 0, %s148
      %s163 = sphi 0, %s149
      %s167 = sphi 0, %s167
      %s169 = sphi 0, %s167
      %s170 = sphi 0, %s169
      %s184 = sphi 0, %s170
      %s188 = sphi 0, %s188
      %s190 = sphi 0, %s188
      %s191 = sphi 0, %s190
      %s205 = sphi 0, %s191
      %s209 = sphi 0, %s209
      %s211 = sphi 0, %s209
      %s212 = sphi 0, %s211
      %s226 = sphi 0, %s212
      %s230 = sphi 0, %s230
      %s232 = sphi 0, %s230
      %s233 = sphi 0, %s232
      %s247 = sphi 0, %s233
      %s251 = sphi 0, %s251
      %s253 = sphi 0, %s251
      %s254 = sphi 0, %s253
      %s268 = sphi 0, %s254
      %s274 = sphi 0, %s276
      %s277 = sphi 0, %s274
      %s278 = sphi 0, %s277
      %s294 = sphi 0, %s278
    $region4: #{_lambda_.1} parent=1 // loop_header_branch
      %31 = sbr.rel (%p29) target = $region8
    $region5: #{_lambda_.1} parent=1 // loop_body
      %s33 = ssub.s32 %s28, 1
      %s34 = ssub.s32 %s28, 2
      %s35 = sadd.s32 %s28, 1
      %s36 = ssub.s32 %s28, %s35
      %p37 = scmp.eq.s32.totalorder %s36, 0
      %s39 = sadd.s32 %s38, 1
      %s40 = scalar_select %p37, %s38, %s39
      %p43 = pneg %p37
      %p44 = scmp.eq.s32.totalorder %s28, 3
      %p45 = por %p43, %p44
      %p46 = scmp.ne.s32.totalorder %s38, %s41
      %p47 = scmp.eq.s32.totalorder %s28, 0
      %p48 = por %p46, %p47
      %p49 = scmp.ne.s32.totalorder %s38, %s41
      %p50 = scmp.eq.s32.totalorder %s33, 3
      %p51 = por %p49, %p50
      %p52 = scmp.ne.s32.totalorder %s41, %s42
      %p53 = scmp.eq.s32.totalorder %s33, 0
      %p54 = por %p52, %p53
      %p55 = scmp.ne.s32.totalorder %s41, %s42
      %p56 = scmp.eq.s32.totalorder %s34, 3
      %p57 = por %p55, %p56
      %p59 = scmp.ne.s32.totalorder %s42, %s58
      %p60 = scmp.eq.s32.totalorder %s34, 0
      %p61 = por %p59, %p60
      %s63 = sadd.s32 %s62, 1
      %p66 = scmp.eq.s32.totalorder %s28, 3
      %p67 = scmp.ne.s32.totalorder %s62, %s64
      %p68 = scmp.eq.s32.totalorder %s28, 0
      %p69 = por %p67, %p68
      %p70 = scmp.ne.s32.totalorder %s62, %s64
      %p71 = scmp.eq.s32.totalorder %s33, 3
      %p72 = por %p70, %p71
      %p73 = scmp.ne.s32.totalorder %s64, %s65
      %p74 = scmp.eq.s32.totalorder %s33, 0
      %p75 = por %p73, %p74
      %p76 = scmp.ne.s32.totalorder %s64, %s65
      %p77 = scmp.eq.s32.totalorder %s34, 3
      %p78 = por %p76, %p77
      %p80 = scmp.ne.s32.totalorder %s65, %s79
      %p81 = scmp.eq.s32.totalorder %s34, 0
      %p82 = por %p80, %p81
      %s84 = sadd.s32 %s83, 1
      %p87 = scmp.eq.s32.totalorder %s28, 3
      %p88 = scmp.ne.s32.totalorder %s83, %s85
      %p89 = scmp.eq.s32.totalorder %s28, 0
      %p90 = por %p88, %p89
      %p91 = scmp.ne.s32.totalorder %s83, %s85
      %p92 = scmp.eq.s32.totalorder %s33, 3
      %p93 = por %p91, %p92
      %p94 = scmp.ne.s32.totalorder %s85, %s86
      %p95 = scmp.eq.s32.totalorder %s33, 0
      %p96 = por %p94, %p95
      %p97 = scmp.ne.s32.totalorder %s85, %s86
      %p98 = scmp.eq.s32.totalorder %s34, 3
      %p99 = por %p97, %p98
      %p101 = scmp.ne.s32.totalorder %s86, %s100
      %p102 = scmp.eq.s32.totalorder %s34, 0
      %p103 = por %p101, %p102
      %s105 = sadd.s32 %s104, 1
      %p108 = scmp.eq.s32.totalorder %s28, 3
      %p109 = scmp.ne.s32.totalorder %s104, %s106
      %p110 = scmp.eq.s32.totalorder %s28, 0
      %p111 = por %p109, %p110
      %p112 = scmp.ne.s32.totalorder %s104, %s106
      %p113 = scmp.eq.s32.totalorder %s33, 3
      %p114 = por %p112, %p113
      %p115 = scmp.ne.s32.totalorder %s106, %s107
      %p116 = scmp.eq.s32.totalorder %s33, 0
      %p117 = por %p115, %p116
      %p118 = scmp.ne.s32.totalorder %s106, %s107
      %p119 = scmp.eq.s32.totalorder %s34, 3
      %p120 = por %p118, %p119
      %p122 = scmp.ne.s32.totalorder %s107, %s121
      %p123 = scmp.eq.s32.totalorder %s34, 0
      %p124 = por %p122, %p123
      %s126 = sadd.s32 %s125, 1
      %p129 = scmp.eq.s32.totalorder %s28, 3
      %p130 = scmp.ne.s32.totalorder %s125, %s127
      %p131 = scmp.eq.s32.totalorder %s28, 0
      %p132 = por %p130, %p131
      %p133 = scmp.ne.s32.totalorder %s125, %s127
      %p134 = scmp.eq.s32.totalorder %s33, 3
      %p135 = por %p133, %p134
      %p136 = scmp.ne.s32.totalorder %s127, %s128
      %p137 = scmp.eq.s32.totalorder %s33, 0
      %p138 = por %p136, %p137
      %p139 = scmp.ne.s32.totalorder %s127, %s128
      %p140 = scmp.eq.s32.totalorder %s34, 3
      %p141 = por %p139, %p140
      %p143 = scmp.ne.s32.totalorder %s128, %s142
      %p144 = scmp.eq.s32.totalorder %s34, 0
      %p145 = por %p143, %p144
      %s147 = sadd.s32 %s146, 1
      %p150 = scmp.eq.s32.totalorder %s28, 3
      %p151 = scmp.ne.s32.totalorder %s146, %s148
      %p152 = scmp.eq.s32.totalorder %s28, 0
      %p153 = por %p151, %p152
      %p154 = scmp.ne.s32.totalorder %s146, %s148
      %p155 = scmp.eq.s32.totalorder %s33, 3
      %p156 = por %p154, %p155
      %p157 = scmp.ne.s32.totalorder %s148, %s149
      %p158 = scmp.eq.s32.totalorder %s33, 0
      %p159 = por %p157, %p158
      %p160 = scmp.ne.s32.totalorder %s148, %s149
      %p161 = scmp.eq.s32.totalorder %s34, 3
      %p162 = por %p160, %p161
      %p164 = scmp.ne.s32.totalorder %s149, %s163
      %p165 = scmp.eq.s32.totalorder %s34, 0
      %p166 = por %p164, %p165
      %s168 = sadd.s32 %s167, 1
      %p171 = scmp.eq.s32.totalorder %s28, 3
      %p172 = scmp.ne.s32.totalorder %s167, %s169
      %p173 = scmp.eq.s32.totalorder %s28, 0
      %p174 = por %p172, %p173
      %p175 = scmp.ne.s32.totalorder %s167, %s169
      %p176 = scmp.eq.s32.totalorder %s33, 3
      %p177 = por %p175, %p176
      %p178 = scmp.ne.s32.totalorder %s169, %s170
      %p179 = scmp.eq.s32.totalorder %s33, 0
      %p180 = por %p178, %p179
      %p181 = scmp.ne.s32.totalorder %s169, %s170
      %p182 = scmp.eq.s32.totalorder %s34, 3
      %p183 = por %p181, %p182
      %p185 = scmp.ne.s32.totalorder %s170, %s184
      %p186 = scmp.eq.s32.totalorder %s34, 0
      %p187 = por %p185, %p186
      %s189 = sadd.s32 %s188, 1
      %p192 = scmp.eq.s32.totalorder %s28, 3
      %p193 = scmp.ne.s32.totalorder %s188, %s190
      %p194 = scmp.eq.s32.totalorder %s28, 0
      %p195 = por %p193, %p194
      %p196 = scmp.ne.s32.totalorder %s188, %s190
      %p197 = scmp.eq.s32.totalorder %s33, 3
      %p198 = por %p196, %p197
      %p199 = scmp.ne.s32.totalorder %s190, %s191
      %p200 = scmp.eq.s32.totalorder %s33, 0
      %p201 = por %p199, %p200
      %p202 = scmp.ne.s32.totalorder %s190, %s191
      %p203 = scmp.eq.s32.totalorder %s34, 3
      %p204 = por %p202, %p203
      %p206 = scmp.ne.s32.totalorder %s191, %s205
      %p207 = scmp.eq.s32.totalorder %s34, 0
      %p208 = por %p206, %p207
      %s210 = sadd.s32 %s209, 1
      %p213 = scmp.eq.s32.totalorder %s28, 3
      %p214 = scmp.ne.s32.totalorder %s209, %s211
      %p215 = scmp.eq.s32.totalorder %s28, 0
      %p216 = por %p214, %p215
      %p217 = scmp.ne.s32.totalorder %s209, %s211
      %p218 = scmp.eq.s32.totalorder %s33, 3
      %p219 = por %p217, %p218
      %p220 = scmp.ne.s32.totalorder %s211, %s212
      %p221 = scmp.eq.s32.totalorder %s33, 0
      %p222 = por %p220, %p221
      %p223 = scmp.ne.s32.totalorder %s211, %s212
      %p224 = scmp.eq.s32.totalorder %s34, 3
      %p225 = por %p223, %p224
      %p227 = scmp.ne.s32.totalorder %s212, %s226
      %p228 = scmp.eq.s32.totalorder %s34, 0
      %p229 = por %p227, %p228
      %s231 = sadd.s32 %s230, 1
      %p234 = scmp.eq.s32.totalorder %s28, 3
      %p235 = scmp.ne.s32.totalorder %s230, %s232
      %p236 = scmp.eq.s32.totalorder %s28, 0
      %p237 = por %p235, %p236
      %p238 = scmp.ne.s32.totalorder %s230, %s232
      %p239 = scmp.eq.s32.totalorder %s33, 3
      %p240 = por %p238, %p239
      %p241 = scmp.ne.s32.totalorder %s232, %s233
      %p242 = scmp.eq.s32.totalorder %s33, 0
      %p243 = por %p241, %p242
      %p244 = scmp.ne.s32.totalorder %s232, %s233
      %p245 = scmp.eq.s32.totalorder %s34, 3
      %p246 = por %p244, %p245
      %p248 = scmp.ne.s32.totalorder %s233, %s247
      %p249 = scmp.eq.s32.totalorder %s34, 0
      %p250 = por %p248, %p249
      %s252 = sadd.s32 %s251, 1
      %p255 = scmp.eq.s32.totalorder %s28, 3
      %p256 = scmp.ne.s32.totalorder %s251, %s253
      %p257 = scmp.eq.s32.totalorder %s28, 0
      %p258 = por %p256, %p257
      %p259 = scmp.ne.s32.totalorder %s251, %s253
      %p260 = scmp.eq.s32.totalorder %s33, 3
      %p261 = por %p259, %p260
      %p262 = scmp.ne.s32.totalorder %s253, %s254
      %p263 = scmp.eq.s32.totalorder %s33, 0
      %p264 = por %p262, %p263
      %p265 = scmp.ne.s32.totalorder %s253, %s254
      %p266 = scmp.eq.s32.totalorder %s34, 3
      %p267 = por %p265, %p266
      %p269 = scmp.ne.s32.totalorder %s254, %s268
      %p270 = scmp.eq.s32.totalorder %s34, 0
      %p271 = por %p269, %p270
      %s272 = ssub.s32 %s28, %s35
      %p273 = scmp.eq.s32.totalorder %s272, 0
      %s275 = sadd.s32 %s274, 1
      %s276 = scalar_select %p273, %s274, %s275
      %p279 = pneg %p273
      %p280 = scmp.eq.s32.totalorder %s28, 3
      %p281 = por %p279, %p280
      %p282 = scmp.ne.s32.totalorder %s274, %s277
      %p283 = scmp.eq.s32.totalorder %s28, 0
      %p284 = por %p282, %p283
      %p285 = scmp.ne.s32.totalorder %s274, %s277
      %p286 = scmp.eq.s32.totalorder %s33, 3
      %p287 = por %p285, %p286
      %p288 = scmp.ne.s32.totalorder %s277, %s278
      %p289 = scmp.eq.s32.totalorder %s33, 0
      %p290 = por %p288, %p289
      %p291 = scmp.ne.s32.totalorder %s277, %s278
      %p292 = scmp.eq.s32.totalorder %s34, 3
      %p293 = por %p291, %p292
      %p295 = scmp.ne.s32.totalorder %s278, %s294
      %p296 = scmp.eq.s32.totalorder %s34, 0
      %p297 = por %p295, %p296
      %p298 = scmp.le.s32.totalorder 1, %s28
      %p299 = scmp.lt.s32.totalorder %s28, 5
      %p300 = pnand %p298, %p299
      %p301 = pneg %p300
      // Predicated region
      $region9: #{_lambda_.1} parent=5 // pred_check
        _
      $region10: #{_lambda_.1} parent=5 // pred_check_branch
        %303 = sbr.rel (%p300) target = $region12
      $region11: #{_lambda_.1} parent=5 // pred_region
        %s304 = ssub.s32 %s28, 1
        // Predicated region
        $region13: #{_lambda_.1} parent=11 // pred_check
          %p305 = pneg %p75
        $region14: #{_lambda_.1} parent=11 // pred_check_branch
          %307 = sbr.rel (%p305) target = $region16
        $region15: #{_lambda_.1} parent=11 // pred_region
          %309 = vsyncadd [#allocation6], 0
          %s310 = sshll.u32 %s1, 4
          %s311 = int_to_ptr.hbm [resolvable:$true] %s310
          %s312 = sshll.u32 [#allocation5], 4
          %s313 = int_to_ptr.vmem [resolvable:$true] %s312
          %318 = dma.hbm_to_vmem [thread:$0]  %s311, 256, %s313, [#allocation6], 128, 128, 8
        $region16: #{_lambda_.1} parent=11 // pred_fallthru
          _
        // Predicated region
        $region17: #{_lambda_.1} parent=11 // pred_check
          %p319 = pneg %p96
        $region18: #{_lambda_.1} parent=11 // pred_check_branch
          %321 = sbr.rel (%p319) target = $region20
        $region19: #{_lambda_.1} parent=11 // pred_region
          _
        $region20: #{_lambda_.1} parent=11 // pred_fallthru
          _
        // Predicated region
        $region21: #{_lambda_.1} parent=11 // pred_check
          %p322 = pneg %p117
        $region22: #{_lambda_.1} parent=11 // pred_check_branch
          %324 = sbr.rel (%p322) target = $region24
        $region23: #{_lambda_.1} parent=11 // pred_region
          %326 = vsyncadd [#allocation6], 0
          %s327 = sshll.u32 %s3, 4
          %s328 = int_to_ptr.hbm [resolvable:$true] %s327
          %s329 = sshll.u32 [#allocation7], 4
          %s330 = int_to_ptr.vmem [resolvable:$true] %s329
          %335 = dma.hbm_to_vmem [thread:$0]  %s328, 12288, %s330, [#allocation6], 384, 384, 24
        $region24: #{_lambda_.1} parent=11 // pred_fallthru
          _
        // Predicated region
        $region25: #{_lambda_.1} parent=11 // pred_check
          %p336 = pneg %p138
        $region26: #{_lambda_.1} parent=11 // pred_check_branch
          %338 = sbr.rel (%p336) target = $region28
        $region27: #{_lambda_.1} parent=11 // pred_region
          %340 = vsyncadd [#allocation9], 0
          %s342 = sshll.u32 %s4, 4
          %s343 = int_to_ptr.hbm [resolvable:$true] %s342
          %s344 = sshll.u32 [#allocation8], 4
          %s345 = int_to_ptr.vmem [resolvable:$true] %s344
          %347 = dma.hbm_to_vmem [thread:$0]  %s343, 96, %s345, [#allocation9]
        $region28: #{_lambda_.1} parent=11 // pred_fallthru
          _
        // Predicated region
        $region29: #{_lambda_.1} parent=11 // pred_check
          %p348 = pneg %p159
        $region30: #{_lambda_.1} parent=11 // pred_check_branch
          %350 = sbr.rel (%p348) target = $region32
        $region31: #{_lambda_.1} parent=11 // pred_region
          %352 = vsyncadd [#allocation9], 0
          %s353 = sshll.u32 %s5, 4
          %s354 = int_to_ptr.hbm [resolvable:$true] %s353
          %s355 = sshll.u32 [#allocation10], 4
          %s356 = int_to_ptr.vmem [resolvable:$true] %s355
          %361 = dma.hbm_to_vmem [thread:$0]  %s354, 4096, %s356, [#allocation9], 128, 128, 8
        $region32: #{_lambda_.1} parent=11 // pred_fallthru
          _
        // Predicated region
        $region33: #{_lambda_.1} parent=11 // pred_check
          %p362 = pneg %p180
        $region34: #{_lambda_.1} parent=11 // pred_check_branch
          %364 = sbr.rel (%p362) target = $region36
        $region35: #{_lambda_.1} parent=11 // pred_region
          %366 = vsyncadd [#allocation12], 0
          %s367 = sshll.u32 %s6, 4
          %s368 = int_to_ptr.hbm [resolvable:$true] %s367
          %s369 = sshll.u32 [#allocation11], 4
          %s370 = int_to_ptr.vmem [resolvable:$true] %s369
          %375 = dma.hbm_to_vmem [thread:$0]  %s368, 512, %s370, [#allocation12], 256, 256, 16
        $region36: #{_lambda_.1} parent=11 // pred_fallthru
          _
        // Predicated region
        $region37: #{_lambda_.1} parent=11 // pred_check
          %p376 = pneg %p201
        $region38: #{_lambda_.1} parent=11 // pred_check_branch
          %378 = sbr.rel (%p376) target = $region40
        $region39: #{_lambda_.1} parent=11 // pred_region
          %380 = vsyncadd [#allocation12], 0
          %s381 = sshll.u32 %s7, 4
          %s382 = int_to_ptr.hbm [resolvable:$true] %s381
          %s383 = sshll.u32 [#allocation13], 4
          %s384 = int_to_ptr.vmem [resolvable:$true] %s383
          %389 = dma.hbm_to_vmem [thread:$0]  %s382, 512, %s384, [#allocation12], 256, 256, 16
        $region40: #{_lambda_.1} parent=11 // pred_fallthru
          _
        // Predicated region
        $region41: #{_lambda_.1} parent=11 // pred_check
          %p390 = pneg %p222
        $region42: #{_lambda_.1} parent=11 // pred_check_branch
          %392 = sbr.rel (%p390) target = $region44
        $region43: #{_lambda_.1} parent=11 // pred_region
          %394 = vsyncadd [#allocation15], 0
          %s395 = sshll.u32 %s8, 4
          %s396 = int_to_ptr.hbm [resolvable:$true] %s395
          %s397 = sshll.u32 [#allocation14], 4
          %s398 = int_to_ptr.vmem [resolvable:$true] %s397
          %403 = dma.hbm_to_vmem [thread:$0]  %s396, 256, %s398, [#allocation15], 128, 128, 8
        $region44: #{_lambda_.1} parent=11 // pred_fallthru
          _
        // Predicated region
        $region45: #{_lambda_.1} parent=11 // pred_check
          %p404 = pneg %p243
        $region46: #{_lambda_.1} parent=11 // pred_check_branch
          %406 = sbr.rel (%p404) target = $region48
        $region47: #{_lambda_.1} parent=11 // pred_region
          %408 = vsyncadd [#allocation15], 0
          %s409 = sshll.u32 %s9, 4
          %s410 = int_to_ptr.hbm [resolvable:$true] %s409
          %s411 = sshll.u32 [#allocation16], 4
          %s412 = int_to_ptr.vmem [resolvable:$true] %s411
          %417 = dma.hbm_to_vmem [thread:$0]  %s410, 4096, %s412, [#allocation15], 128, 128, 8
        $region48: #{_lambda_.1} parent=11 // pred_fallthru
          _
        // Predicated region
        $region49: #{_lambda_.1} parent=11 // pred_check
          %p418 = pneg %p264
        $region50: #{_lambda_.1} parent=11 // pred_check_branch
          %420 = sbr.rel (%p418) target = $region52
        $region51: #{_lambda_.1} parent=11 // pred_region
          %422 = vsyncadd [#allocation18], 0
          %s424 = sshll.u32 %s10, 4
          %s425 = int_to_ptr.hbm [resolvable:$true] %s424
          %s426 = sshll.u32 [#allocation17], 4
          %s427 = int_to_ptr.vmem [resolvable:$true] %s426
          %429 = dma.hbm_to_vmem [thread:$0]  %s425, 32, %s427, [#allocation18]
        $region52: #{_lambda_.1} parent=11 // pred_fallthru
          _
      $region12: #{_lambda_.1} parent=5 // pred_fallthru
        _
      %p430 = scmp.lt.s32.totalorder %s28, 4
      // Predicated region
      $region53: #{_lambda_.1} parent=5 // pred_check
        %p431 = pneg %p430
      $region54: #{_lambda_.1} parent=5 // pred_check_branch
        %433 = sbr.rel (%p431) target = $region56
      $region55: #{_lambda_.1} parent=5 // pred_region
        // Predicated region
        $region57: #{_lambda_.1} parent=55 // pred_check
          %p434 = pneg %p48
        $region58: #{_lambda_.1} parent=55 // pred_check_branch
          %436 = sbr.rel (%p434) target = $region60
        $region59: #{_lambda_.1} parent=55 // pred_region
          %s437 = sand.u32 %s38, 1
          %s438 = scalar_lea.sflag [#allocation3], %s437
          %s439 = sand.u32 %s38, 1
          %s440 = smul.addr %s439, 32
          %s441 = scalar_lea.vmem [#allocation2], %s440
          %443 = vsyncadd %s438, 0
          %s444 = smul.addr %s28, 4
          %s445 = smul.addr %s444, 8
          %s446 = scalar_lea.hbm %s0, %s445
          %s447 = sshll.u32 %s446, 4
          %s448 = int_to_ptr.hbm [resolvable:$true] %s447
          %s449 = sshll.u32 %s441, 4
          %s450 = int_to_ptr.vmem [resolvable:$true] %s449
          %455 = dma.hbm_to_vmem [thread:$0]  %s448, 512, %s450, %s438, 256, 256, 16
        $region60: #{_lambda_.1} parent=55 // pred_fallthru
          _
      $region56: #{_lambda_.1} parent=5 // pred_fallthru
        _
      %p456 = scmp.le.s32.totalorder 1, %s28
      %p457 = scmp.lt.s32.totalorder %s28, 5
      %p458 = pnand %p456, %p457
      %p459 = pneg %p458
      // Predicated region
      $region61: #{_lambda_.1} parent=5 // pred_check
        _
      $region62: #{_lambda_.1} parent=5 // pred_check_branch
        %461 = sbr.rel (%p458) target = $region64
      $region63: #{_lambda_.1} parent=5 // pred_region
        %s462 = ssub.s32 %s28, 1
        %s463 = sand.u32 %s41, 1
        %s464 = scalar_lea.sflag [#allocation3], %s463
        %s465 = sand.u32 %s41, 1
        %s466 = smul.addr %s465, 32
        %s467 = scalar_lea.vmem [#allocation2], %s466
        // Predicated region
        $region65: #{_lambda_.1} parent=63 // pred_check
          %p468 = pneg %p54
        $region66: #{_lambda_.1} parent=63 // pred_check_branch
          %470 = sbr.rel (%p468) target = $region68
        $region67: #{_lambda_.1} parent=63 // pred_region
          %472 = dma.done %s464, 512
        $region68: #{_lambda_.1} parent=63 // pred_fallthru
          _
        // Predicated region
        $region69: #{_lambda_.1} parent=63 // pred_check
          %p473 = pneg %p75
        $region70: #{_lambda_.1} parent=63 // pred_check_branch
          %475 = sbr.rel (%p473) target = $region72
        $region71: #{_lambda_.1} parent=63 // pred_region
          %477 = dma.done [#allocation6], 256
        $region72: #{_lambda_.1} parent=63 // pred_fallthru
          _
        // Predicated region
        $region73: #{_lambda_.1} parent=63 // pred_check
          %p478 = pneg %p117
        $region74: #{_lambda_.1} parent=63 // pred_check_branch
          %480 = sbr.rel (%p478) target = $region76
        $region75: #{_lambda_.1} parent=63 // pred_region
          %482 = dma.done [#allocation6], 12288
        $region76: #{_lambda_.1} parent=63 // pred_fallthru
          _
        // Predicated region
        $region77: #{_lambda_.1} parent=63 // pred_check
          %p483 = pneg %p138
        $region78: #{_lambda_.1} parent=63 // pred_check_branch
          %485 = sbr.rel (%p483) target = $region80
        $region79: #{_lambda_.1} parent=63 // pred_region
          %487 = dma.done [#allocation9], 96
        $region80: #{_lambda_.1} parent=63 // pred_fallthru
          _
        // Predicated region
        $region81: #{_lambda_.1} parent=63 // pred_check
          %p488 = pneg %p159
        $region82: #{_lambda_.1} parent=63 // pred_check_branch
          %490 = sbr.rel (%p488) target = $region84
        $region83: #{_lambda_.1} parent=63 // pred_region
          %492 = dma.done [#allocation9], 4096
        $region84: #{_lambda_.1} parent=63 // pred_fallthru
          _
        // Predicated region
        $region85: #{_lambda_.1} parent=63 // pred_check
          %p493 = pneg %p180
        $region86: #{_lambda_.1} parent=63 // pred_check_branch
          %495 = sbr.rel (%p493) target = $region88
        $region87: #{_lambda_.1} parent=63 // pred_region
          %497 = dma.done [#allocation12], 512
        $region88: #{_lambda_.1} parent=63 // pred_fallthru
          _
        // Predicated region
        $region89: #{_lambda_.1} parent=63 // pred_check
          %p498 = pneg %p201
        $region90: #{_lambda_.1} parent=63 // pred_check_branch
          %500 = sbr.rel (%p498) target = $region92
        $region91: #{_lambda_.1} parent=63 // pred_region
          %502 = dma.done [#allocation12], 512
        $region92: #{_lambda_.1} parent=63 // pred_fallthru
          _
        // Predicated region
        $region93: #{_lambda_.1} parent=63 // pred_check
          %p503 = pneg %p222
        $region94: #{_lambda_.1} parent=63 // pred_check_branch
          %505 = sbr.rel (%p503) target = $region96
        $region95: #{_lambda_.1} parent=63 // pred_region
          %507 = dma.done [#allocation15], 256
        $region96: #{_lambda_.1} parent=63 // pred_fallthru
          _
        // Predicated region
        $region97: #{_lambda_.1} parent=63 // pred_check
          %p508 = pneg %p243
        $region98: #{_lambda_.1} parent=63 // pred_check_branch
          %510 = sbr.rel (%p508) target = $region100
        $region99: #{_lambda_.1} parent=63 // pred_region
          %512 = dma.done [#allocation15], 4096
        $region100: #{_lambda_.1} parent=63 // pred_fallthru
          _
        // Predicated region
        $region101: #{_lambda_.1} parent=63 // pred_check
          %p513 = pneg %p264
        $region102: #{_lambda_.1} parent=63 // pred_check_branch
          %515 = sbr.rel (%p513) target = $region104
        $region103: #{_lambda_.1} parent=63 // pred_region
          %517 = dma.done [#allocation18], 32
        $region104: #{_lambda_.1} parent=63 // pred_fallthru
          _
        %s518 = sand.u32 %s41, 1
        %s519 = scalar_lea.sflag [#allocation3], %s518
        %s520 = sand.u32 %s41, 1
        %s521 = smul.addr %s520, 32
        %s522 = scalar_lea.vmem [#allocation2], %s521
        %p523 = pneg %p54
        %p524 = pneg %p51
        %p525 = pneg %p75
        %p526 = pneg %p72
        %p527 = pneg %p96
        %p528 = pneg %p93
        %p529 = pneg %p117
        %p530 = pneg %p114
        %p531 = pneg %p138
        %p532 = pneg %p135
        %p533 = pneg %p159
        %p534 = pneg %p156
        %p535 = pneg %p180
        %p536 = pneg %p177
        %p537 = pneg %p201
        %p538 = pneg %p198
        %p539 = pneg %p222
        %p540 = pneg %p219
        %p541 = pneg %p243
        %p542 = pneg %p240
        %p543 = pneg %p264
        %p544 = pneg %p261
        %p545 = pneg %p290
        %p546 = pneg %p287
        %s547 = sand.u32 %s277, 1
        %s548 = scalar_lea.sflag [#allocation4], %s547
        %s549 = sand.u32 %s277, 1
        %s550 = smul.addr %s549, 32
        %s551 = scalar_lea.vmem [#allocation19], %s550
        %v553 = vld [vmem:[%s467] sm:$0xff]
        %v554 = vld [vmem:[%s467 + $0x8] sm:$0xff]
        %v555 = vld [vmem:[%s467 + $0x10] sm:$0xff]
        %v556 = vld [vmem:[%s467 + $0x18] sm:$0xff]
        %v557 = vld [vmem:[#allocation5] sm:$0xff]
        %v558 = vld [vmem:[#allocation5 + $0x8] sm:$0xff]
        %vm559 = vcmask 130048
        %v561 = vsel %vm559, %v557, 0
        %v564 = vsel %vm559, %v558, 0
        %566 = vmatpush.msra.mxu0 0.0
        %567 = vmatpush.msra.mxu0 0.0
        %568 = vmatpush.msra.mxu0 0.0
        %569 = vmatpush.msra.mxu0 0.0
        %570 = vmatpush.msra.mxu0 0.0
        %571 = vmatpush.msra.mxu0 0.0
        %572 = vmatpush.msra.mxu0 0.0
        %573 = vmatpush.msra.mxu0 0.0
        %574 = vmatpush.msra.mxu0 0.0
        %575 = vmatpush.msra.mxu0 0.0
        %576 = vmatpush.msra.mxu0 0.0
        %577 = vmatpush.msra.mxu0 0.0
        %578 = vmatpush.msra.mxu0 0.0
        %579 = vmatpush.msra.mxu0 0.0
        %580 = vmatpush.msra.mxu0 %v555
        %581 = vmatpush.msra.mxu0 %v553
        %582 = vmatmul.f32.gmra.mxu0 %v561
        %v583 = vpop.f32.mrf.mxu0
        %v584 = vadd.f32 0.0, %v583
        %585 = vmatmul.f32.gmra.mxu0 %v564
        %v586 = vpop.f32.mrf.mxu0
        %v587 = vadd.f32 0.0, %v586
        %588 = vdwg.mxu0
        %589 = vmatpush.msra.mxu0 0.0
        %590 = vmatpush.msra.mxu0 0.0
        %591 = vmatpush.msra.mxu0 0.0
        %592 = vmatpush.msra.mxu0 0.0
        %593 = vmatpush.msra.mxu0 0.0
        %594 = vmatpush.msra.mxu0 0.0
        %595 = vmatpush.msra.mxu0 0.0
        %596 = vmatpush.msra.mxu0 0.0
        %597 = vmatpush.msra.mxu0 0.0
        %598 = vmatpush.msra.mxu0 0.0
        %599 = vmatpush.msra.mxu0 0.0
        %600 = vmatpush.msra.mxu0 0.0
        %601 = vmatpush.msra.mxu0 0.0
        %602 = vmatpush.msra.mxu0 0.0
        %603 = vmatpush.msra.mxu0 %v556
        %604 = vmatpush.msra.mxu0 %v554
        %605 = vmatmul.f32.gmra.mxu0 %v561
        %v606 = vpop.f32.mrf.mxu0
        %v607 = vadd.f32 0.0, %v606
        %608 = vmatmul.f32.gmra.mxu0 %v564
        %v609 = vpop.f32.mrf.mxu0
        %v610 = vadd.f32 0.0, %v609
        %611 = vdwg.mxu0
        %v612 = vld [vmem:[%s2] sm:$0x3]
        %v613 = vsub.f32 1.0, %v612
        %v615 = vperm.slane %v613, 0
        %v616 = vperm.slane %v613, 1
        %v619 = vmul.f32 %v553, %v615
        %v620 = vmul.f32 %v554, %v616
        %v621 = vmul.f32 %v555, %v615
        %v622 = vmul.f32 %v556, %v616
        %v624 = vperm.slane %v612, 0
        %v625 = vperm.slane %v612, 1
        %v628 = vmul.f32 %v584, %v624
        %v629 = vmul.f32 %v607, %v625
        %v630 = vmul.f32 %v587, %v624
        %v631 = vmul.f32 %v610, %v625
        %v632 = vadd.f32 %v619, %v628
        %v633 = vadd.f32 %v620, %v629
        %v634 = vadd.f32 %v621, %v630
        %v635 = vadd.f32 %v622, %v631
        %v636 = vpack.c.bf16 %v634, %v632
        %v637 = vpack.c.bf16 %v635, %v633
        %v638 = vld [vmem:[#allocation7] sm:$0xff]
        %v639 = vld [vmem:[#allocation7 + $0x8] sm:$0xff]
        %v640 = vld [vmem:[#allocation7 + $0x10] sm:$0xff]
        %v641 = vld [vmem:[#allocation7 + $0x18] sm:$0xff]
        %v642 = vld [vmem:[#allocation7 + $0x20] sm:$0xff]
        %v643 = vld [vmem:[#allocation7 + $0x28] sm:$0xff]
        %v644 = vld [vmem:[#allocation7 + $0x30] sm:$0xff]
        %v645 = vld [vmem:[#allocation7 + $0x38] sm:$0xff]
        %v646 = vld [vmem:[#allocation7 + $0x40] sm:$0xff]
        %v647 = vld [vmem:[#allocation7 + $0x48] sm:$0xff]
        %v648 = vld [vmem:[#allocation7 + $0x50] sm:$0xff]
        %v649 = vld [vmem:[#allocation7 + $0x58] sm:$0xff]
        %v650 = vld [vmem:[#allocation7 + $0x60] sm:$0xff]
        %v651 = vld [vmem:[#allocation7 + $0x68] sm:$0xff]
        %v652 = vld [vmem:[#allocation7 + $0x70] sm:$0xff]
        %v653 = vld [vmem:[#allocation7 + $0x78] sm:$0xff]
        %v654 = vld [vmem:[#allocation7 + $0x80] sm:$0xff]
        %v655 = vld [vmem:[#allocation7 + $0x88] sm:$0xff]
        %v656 = vld [vmem:[#allocation7 + $0x90] sm:$0xff]
        %v657 = vld [vmem:[#allocation7 + $0x98] sm:$0xff]
        %v658 = vld [vmem:[#allocation7 + $0xa0] sm:$0xff]
        %v659 = vld [vmem:[#allocation7 + $0xa8] sm:$0xff]
        %v660 = vld [vmem:[#allocation7 + $0xb0] sm:$0xff]
        %v661 = vld [vmem:[#allocation7 + $0xb8] sm:$0xff]
        %v662 = vld [vmem:[#allocation7 + $0xc0] sm:$0xff]
        %v663 = vld [vmem:[#allocation7 + $0xc8] sm:$0xff]
        %v664 = vld [vmem:[#allocation7 + $0xd0] sm:$0xff]
        %v665 = vld [vmem:[#allocation7 + $0xd8] sm:$0xff]
        %v666 = vld [vmem:[#allocation7 + $0xe0] sm:$0xff]
        %v667 = vld [vmem:[#allocation7 + $0xe8] sm:$0xff]
        %v668 = vld [vmem:[#allocation7 + $0xf0] sm:$0xff]
        %v669 = vld [vmem:[#allocation7 + $0xf8] sm:$0xff]
        %v670 = vld [vmem:[#allocation7 + $0x100] sm:$0xff]
        %v671 = vld [vmem:[#allocation7 + $0x108] sm:$0xff]
        %v672 = vld [vmem:[#allocation7 + $0x110] sm:$0xff]
        %v673 = vld [vmem:[#allocation7 + $0x118] sm:$0xff]
        %v674 = vld [vmem:[#allocation7 + $0x120] sm:$0xff]
        %v675 = vld [vmem:[#allocation7 + $0x128] sm:$0xff]
        %v676 = vld [vmem:[#allocation7 + $0x130] sm:$0xff]
        %v677 = vld [vmem:[#allocation7 + $0x138] sm:$0xff]
        %v678 = vld [vmem:[#allocation7 + $0x140] sm:$0xff]
        %v679 = vld [vmem:[#allocation7 + $0x148] sm:$0xff]
        %v680 = vld [vmem:[#allocation7 + $0x150] sm:$0xff]
        %v681 = vld [vmem:[#allocation7 + $0x158] sm:$0xff]
        %v682 = vld [vmem:[#allocation7 + $0x160] sm:$0xff]
        %v683 = vld [vmem:[#allocation7 + $0x168] sm:$0xff]
        %v684 = vld [vmem:[#allocation7 + $0x170] sm:$0xff]
        %v685 = vld [vmem:[#allocation7 + $0x178] sm:$0xff]
        %v686 = vld [vmem:[#allocation7 + $0x180] sm:$0xff]
        %v687 = vld [vmem:[#allocation7 + $0x188] sm:$0xff]
        %v688 = vld [vmem:[#allocation7 + $0x190] sm:$0xff]
        %v689 = vld [vmem:[#allocation7 + $0x198] sm:$0xff]
        %v690 = vld [vmem:[#allocation7 + $0x1a0] sm:$0xff]
        %v691 = vld [vmem:[#allocation7 + $0x1a8] sm:$0xff]
        %v692 = vld [vmem:[#allocation7 + $0x1b0] sm:$0xff]
        %v693 = vld [vmem:[#allocation7 + $0x1b8] sm:$0xff]
        %v694 = vld [vmem:[#allocation7 + $0x1c0] sm:$0xff]
        %v695 = vld [vmem:[#allocation7 + $0x1c8] sm:$0xff]
        %v696 = vld [vmem:[#allocation7 + $0x1d0] sm:$0xff]
        %v697 = vld [vmem:[#allocation7 + $0x1d8] sm:$0xff]
        %v698 = vld [vmem:[#allocation7 + $0x1e0] sm:$0xff]
        %v699 = vld [vmem:[#allocation7 + $0x1e8] sm:$0xff]
        %v700 = vld [vmem:[#allocation7 + $0x1f0] sm:$0xff]
        %v701 = vld [vmem:[#allocation7 + $0x1f8] sm:$0xff]
        %v702 = vld [vmem:[#allocation7 + $0x200] sm:$0xff]
        %v703 = vld [vmem:[#allocation7 + $0x208] sm:$0xff]
        %v704 = vld [vmem:[#allocation7 + $0x210] sm:$0xff]
        %v705 = vld [vmem:[#allocation7 + $0x218] sm:$0xff]
        %v706 = vld [vmem:[#allocation7 + $0x220] sm:$0xff]
        %v707 = vld [vmem:[#allocation7 + $0x228] sm:$0xff]
        %v708 = vld [vmem:[#allocation7 + $0x230] sm:$0xff]
        %v709 = vld [vmem:[#allocation7 + $0x238] sm:$0xff]
        %v710 = vld [vmem:[#allocation7 + $0x240] sm:$0xff]
        %v711 = vld [vmem:[#allocation7 + $0x248] sm:$0xff]
        %v712 = vld [vmem:[#allocation7 + $0x250] sm:$0xff]
        %v713 = vld [vmem:[#allocation7 + $0x258] sm:$0xff]
        %v714 = vld [vmem:[#allocation7 + $0x260] sm:$0xff]
        %v715 = vld [vmem:[#allocation7 + $0x268] sm:$0xff]
        %v716 = vld [vmem:[#allocation7 + $0x270] sm:$0xff]
        %v717 = vld [vmem:[#allocation7 + $0x278] sm:$0xff]
        %v718 = vld [vmem:[#allocation7 + $0x280] sm:$0xff]
        %v719 = vld [vmem:[#allocation7 + $0x288] sm:$0xff]
        %v720 = vld [vmem:[#allocation7 + $0x290] sm:$0xff]
        %v721 = vld [vmem:[#allocation7 + $0x298] sm:$0xff]
        %v722 = vld [vmem:[#allocation7 + $0x2a0] sm:$0xff]
        %v723 = vld [vmem:[#allocation7 + $0x2a8] sm:$0xff]
        %v724 = vld [vmem:[#allocation7 + $0x2b0] sm:$0xff]
        %v725 = vld [vmem:[#allocation7 + $0x2b8] sm:$0xff]
        %v726 = vld [vmem:[#allocation7 + $0x2c0] sm:$0xff]
        %v727 = vld [vmem:[#allocation7 + $0x2c8] sm:$0xff]
        %v728 = vld [vmem:[#allocation7 + $0x2d0] sm:$0xff]
        %v729 = vld [vmem:[#allocation7 + $0x2d8] sm:$0xff]
        %v730 = vld [vmem:[#allocation7 + $0x2e0] sm:$0xff]
        %v731 = vld [vmem:[#allocation7 + $0x2e8] sm:$0xff]
        %v732 = vld [vmem:[#allocation7 + $0x2f0] sm:$0xff]
        %v733 = vld [vmem:[#allocation7 + $0x2f8] sm:$0xff]
        %v734 = vld [vmem:[#allocation8] sm:$0x3f]
        %v736 = vperm.slane %v734, 0
        %v737 = vperm.slane %v734, 1
        %v738 = vperm.slane %v734, 2
        %v739 = vperm.slane %v734, 3
        %v740 = vperm.slane %v734, 4
        %v741 = vperm.slane %v734, 5
        %v844 = vunpack.c.l.b16 %v638
        %v845 = vunpack.c.h.b16 %v638
        %v846 = vunpack.c.l.b16 %v639
        %v847 = vunpack.c.h.b16 %v639
        %v848 = vunpack.c.l.b16 %v640
        %v849 = vunpack.c.h.b16 %v640
        %v850 = vunpack.c.l.b16 %v641
        %v851 = vunpack.c.h.b16 %v641
        %v852 = vunpack.c.l.b16 %v642
        %v853 = vunpack.c.h.b16 %v642
        %v854 = vunpack.c.l.b16 %v643
        %v855 = vunpack.c.h.b16 %v643
        %v856 = vunpack.c.l.b16 %v644
        %v857 = vunpack.c.h.b16 %v644
        %v858 = vunpack.c.l.b16 %v645
        %v859 = vunpack.c.h.b16 %v645
        %v860 = vunpack.c.l.b16 %v646
        %v861 = vunpack.c.h.b16 %v646
        %v862 = vunpack.c.l.b16 %v647
        %v863 = vunpack.c.h.b16 %v647
        %v864 = vunpack.c.l.b16 %v648
        %v865 = vunpack.c.h.b16 %v648
        %v866 = vunpack.c.l.b16 %v649
        %v867 = vunpack.c.h.b16 %v649
        %v868 = vunpack.c.l.b16 %v650
        %v869 = vunpack.c.h.b16 %v650
        %v870 = vunpack.c.l.b16 %v651
        %v871 = vunpack.c.h.b16 %v651
        %v872 = vunpack.c.l.b16 %v652
        %v873 = vunpack.c.h.b16 %v652
        %v874 = vunpack.c.l.b16 %v653
        %v875 = vunpack.c.h.b16 %v653
        %v876 = vunpack.c.l.b16 %v654
        %v877 = vunpack.c.h.b16 %v654
        %v878 = vunpack.c.l.b16 %v655
        %v879 = vunpack.c.h.b16 %v655
        %v880 = vunpack.c.l.b16 %v656
        %v881 = vunpack.c.h.b16 %v656
        %v882 = vunpack.c.l.b16 %v657
        %v883 = vunpack.c.h.b16 %v657
        %v884 = vunpack.c.l.b16 %v658
        %v885 = vunpack.c.h.b16 %v658
        %v886 = vunpack.c.l.b16 %v659
        %v887 = vunpack.c.h.b16 %v659
        %v888 = vunpack.c.l.b16 %v660
        %v889 = vunpack.c.h.b16 %v660
        %v890 = vunpack.c.l.b16 %v661
        %v891 = vunpack.c.h.b16 %v661
        %v892 = vunpack.c.l.b16 %v662
        %v893 = vunpack.c.h.b16 %v662
        %v894 = vunpack.c.l.b16 %v663
        %v895 = vunpack.c.h.b16 %v663
        %v896 = vunpack.c.l.b16 %v664
        %v897 = vunpack.c.h.b16 %v664
        %v898 = vunpack.c.l.b16 %v665
        %v899 = vunpack.c.h.b16 %v665
        %v900 = vunpack.c.l.b16 %v666
        %v901 = vunpack.c.h.b16 %v666
        %v902 = vunpack.c.l.b16 %v667
        %v903 = vunpack.c.h.b16 %v667
        %v904 = vunpack.c.l.b16 %v668
        %v905 = vunpack.c.h.b16 %v668
        %v906 = vunpack.c.l.b16 %v669
        %v907 = vunpack.c.h.b16 %v669
        %v908 = vunpack.c.l.b16 %v670
        %v909 = vunpack.c.h.b16 %v670
        %v910 = vunpack.c.l.b16 %v671
        %v911 = vunpack.c.h.b16 %v671
        %v912 = vunpack.c.l.b16 %v672
        %v913 = vunpack.c.h.b16 %v672
        %v914 = vunpack.c.l.b16 %v673
        %v915 = vunpack.c.h.b16 %v673
        %v916 = vunpack.c.l.b16 %v674
        %v917 = vunpack.c.h.b16 %v674
        %v918 = vunpack.c.l.b16 %v675
        %v919 = vunpack.c.h.b16 %v675
        %v920 = vunpack.c.l.b16 %v676
        %v921 = vunpack.c.h.b16 %v676
        %v922 = vunpack.c.l.b16 %v677
        %v923 = vunpack.c.h.b16 %v677
        %v924 = vunpack.c.l.b16 %v678
        %v925 = vunpack.c.h.b16 %v678
        %v926 = vunpack.c.l.b16 %v679
        %v927 = vunpack.c.h.b16 %v679
        %v928 = vunpack.c.l.b16 %v680
        %v929 = vunpack.c.h.b16 %v680
        %v930 = vunpack.c.l.b16 %v681
        %v931 = vunpack.c.h.b16 %v681
        %v932 = vunpack.c.l.b16 %v682
        %v933 = vunpack.c.h.b16 %v682
        %v934 = vunpack.c.l.b16 %v683
        %v935 = vunpack.c.h.b16 %v683
        %v936 = vunpack.c.l.b16 %v684
        %v937 = vunpack.c.h.b16 %v684
        %v938 = vunpack.c.l.b16 %v685
        %v939 = vunpack.c.h.b16 %v685
        %v940 = vunpack.c.l.b16 %v686
        %v941 = vunpack.c.h.b16 %v686
        %v942 = vunpack.c.l.b16 %v687
        %v943 = vunpack.c.h.b16 %v687
        %v944 = vunpack.c.l.b16 %v688
        %v945 = vunpack.c.h.b16 %v688
        %v946 = vunpack.c.l.b16 %v689
        %v947 = vunpack.c.h.b16 %v689
        %v948 = vunpack.c.l.b16 %v690
        %v949 = vunpack.c.h.b16 %v690
        %v950 = vunpack.c.l.b16 %v691
        %v951 = vunpack.c.h.b16 %v691
        %v952 = vunpack.c.l.b16 %v692
        %v953 = vunpack.c.h.b16 %v692
        %v954 = vunpack.c.l.b16 %v693
        %v955 = vunpack.c.h.b16 %v693
        %v956 = vunpack.c.l.b16 %v694
        %v957 = vunpack.c.h.b16 %v694
        %v958 = vunpack.c.l.b16 %v695
        %v959 = vunpack.c.h.b16 %v695
        %v960 = vunpack.c.l.b16 %v696
        %v961 = vunpack.c.h.b16 %v696
        %v962 = vunpack.c.l.b16 %v697
        %v963 = vunpack.c.h.b16 %v697
        %v964 = vunpack.c.l.b16 %v698
        %v965 = vunpack.c.h.b16 %v698
        %v966 = vunpack.c.l.b16 %v699
        %v967 = vunpack.c.h.b16 %v699
        %v968 = vunpack.c.l.b16 %v700
        %v969 = vunpack.c.h.b16 %v700
        %v970 = vunpack.c.l.b16 %v701
        %v971 = vunpack.c.h.b16 %v701
        %v972 = vunpack.c.l.b16 %v702
        %v973 = vunpack.c.h.b16 %v702
        %v974 = vunpack.c.l.b16 %v703
        %v975 = vunpack.c.h.b16 %v703
        %v976 = vunpack.c.l.b16 %v704
        %v977 = vunpack.c.h.b16 %v704
        %v978 = vunpack.c.l.b16 %v705
        %v979 = vunpack.c.h.b16 %v705
        %v980 = vunpack.c.l.b16 %v706
        %v981 = vunpack.c.h.b16 %v706
        %v982 = vunpack.c.l.b16 %v707
        %v983 = vunpack.c.h.b16 %v707
        %v984 = vunpack.c.l.b16 %v708
        %v985 = vunpack.c.h.b16 %v708
        %v986 = vunpack.c.l.b16 %v709
        %v987 = vunpack.c.h.b16 %v709
        %v988 = vunpack.c.l.b16 %v710
        %v989 = vunpack.c.h.b16 %v710
        %v990 = vunpack.c.l.b16 %v711
        %v991 = vunpack.c.h.b16 %v711
        %v992 = vunpack.c.l.b16 %v712
        %v993 = vunpack.c.h.b16 %v712
        %v994 = vunpack.c.l.b16 %v713
        %v995 = vunpack.c.h.b16 %v713
        %v996 = vunpack.c.l.b16 %v714
        %v997 = vunpack.c.h.b16 %v714
        %v998 = vunpack.c.l.b16 %v715
        %v999 = vunpack.c.h.b16 %v715
        %v1000 = vunpack.c.l.b16 %v716
        %v1001 = vunpack.c.h.b16 %v716
        %v1002 = vunpack.c.l.b16 %v717
        %v1003 = vunpack.c.h.b16 %v717
        %v1004 = vunpack.c.l.b16 %v718
        %v1005 = vunpack.c.h.b16 %v718
        %v1006 = vunpack.c.l.b16 %v719
        %v1007 = vunpack.c.h.b16 %v719
        %v1008 = vunpack.c.l.b16 %v720
        %v1009 = vunpack.c.h.b16 %v720
        %v1010 = vunpack.c.l.b16 %v721
        %v1011 = vunpack.c.h.b16 %v721
        %v1012 = vunpack.c.l.b16 %v722
        %v1013 = vunpack.c.h.b16 %v722
        %v1014 = vunpack.c.l.b16 %v723
        %v1015 = vunpack.c.h.b16 %v723
        %v1016 = vunpack.c.l.b16 %v724
        %v1017 = vunpack.c.h.b16 %v724
        %v1018 = vunpack.c.l.b16 %v725
        %v1019 = vunpack.c.h.b16 %v725
        %v1020 = vunpack.c.l.b16 %v726
        %v1021 = vunpack.c.h.b16 %v726
        %v1022 = vunpack.c.l.b16 %v727
        %v1023 = vunpack.c.h.b16 %v727
        %v1024 = vunpack.c.l.b16 %v728
        %v1025 = vunpack.c.h.b16 %v728
        %v1026 = vunpack.c.l.b16 %v729
        %v1027 = vunpack.c.h.b16 %v729
        %v1028 = vunpack.c.l.b16 %v730
        %v1029 = vunpack.c.h.b16 %v730
        %v1030 = vunpack.c.l.b16 %v731
        %v1031 = vunpack.c.h.b16 %v731
        %v1032 = vunpack.c.l.b16 %v732
        %v1033 = vunpack.c.h.b16 %v732
        %v1034 = vunpack.c.l.b16 %v733
        %v1035 = vunpack.c.h.b16 %v733
        %v1036 = vpack.c.b16 %v850, %v844
        %v1037 = vpack.c.b16 %v851, %v845
        %v1038 = vpack.c.b16 %v852, %v846
        %v1039 = vpack.c.b16 %v853, %v847
        %v1040 = vpack.c.b16 %v854, %v848
        %v1041 = vpack.c.b16 %v855, %v849
        %v1042 = vpack.c.b16 %v862, %v856
        %v1043 = vpack.c.b16 %v863, %v857
        %v1044 = vpack.c.b16 %v864, %v858
        %v1045 = vpack.c.b16 %v865, %v859
        %v1046 = vpack.c.b16 %v866, %v860
        %v1047 = vpack.c.b16 %v867, %v861
        %v1048 = vpack.c.b16 %v874, %v868
        %v1049 = vpack.c.b16 %v875, %v869
        %v1050 = vpack.c.b16 %v876, %v870
        %v1051 = vpack.c.b16 %v877, %v871
        %v1052 = vpack.c.b16 %v878, %v872
        %v1053 = vpack.c.b16 %v879, %v873
        %v1054 = vpack.c.b16 %v886, %v880
        %v1055 = vpack.c.b16 %v887, %v881
        %v1056 = vpack.c.b16 %v888, %v882
        %v1057 = vpack.c.b16 %v889, %v883
        %v1058 = vpack.c.b16 %v890, %v884
        %v1059 = vpack.c.b16 %v891, %v885
        %v1060 = vpack.c.b16 %v898, %v892
        %v1061 = vpack.c.b16 %v899, %v893
        %v1062 = vpack.c.b16 %v900, %v894
        %v1063 = vpack.c.b16 %v901, %v895
        %v1064 = vpack.c.b16 %v902, %v896
        %v1065 = vpack.c.b16 %v903, %v897
        %v1066 = vpack.c.b16 %v910, %v904
        %v1067 = vpack.c.b16 %v911, %v905
        %v1068 = vpack.c.b16 %v912, %v906
        %v1069 = vpack.c.b16 %v913, %v907
        %v1070 = vpack.c.b16 %v914, %v908
        %v1071 = vpack.c.b16 %v915, %v909
        %v1072 = vpack.c.b16 %v922, %v916
        %v1073 = vpack.c.b16 %v923, %v917
        %v1074 = vpack.c.b16 %v924, %v918
        %v1075 = vpack.c.b16 %v925, %v919
        %v1076 = vpack.c.b16 %v926, %v920
        %v1077 = vpack.c.b16 %v927, %v921
        %v1078 = vpack.c.b16 %v934, %v928
        %v1079 = vpack.c.b16 %v935, %v929
        %v1080 = vpack.c.b16 %v936, %v930
        %v1081 = vpack.c.b16 %v937, %v931
        %v1082 = vpack.c.b16 %v938, %v932
        %v1083 = vpack.c.b16 %v939, %v933
        %v1084 = vpack.c.b16 %v946, %v940
        %v1085 = vpack.c.b16 %v947, %v941
        %v1086 = vpack.c.b16 %v948, %v942
        %v1087 = vpack.c.b16 %v949, %v943
        %v1088 = vpack.c.b16 %v950, %v944
        %v1089 = vpack.c.b16 %v951, %v945
        %v1090 = vpack.c.b16 %v958, %v952
        %v1091 = vpack.c.b16 %v959, %v953
        %v1092 = vpack.c.b16 %v960, %v954
        %v1093 = vpack.c.b16 %v961, %v955
        %v1094 = vpack.c.b16 %v962, %v956
        %v1095 = vpack.c.b16 %v963, %v957
        %v1096 = vpack.c.b16 %v970, %v964
        %v1097 = vpack.c.b16 %v971, %v965
        %v1098 = vpack.c.b16 %v972, %v966
        %v1099 = vpack.c.b16 %v973, %v967
        %v1100 = vpack.c.b16 %v974, %v968
        %v1101 = vpack.c.b16 %v975, %v969
        %v1102 = vpack.c.b16 %v982, %v976
        %v1103 = vpack.c.b16 %v983, %v977
        %v1104 = vpack.c.b16 %v984, %v978
        %v1105 = vpack.c.b16 %v985, %v979
        %v1106 = vpack.c.b16 %v986, %v980
        %v1107 = vpack.c.b16 %v987, %v981
        %v1108 = vpack.c.b16 %v994, %v988
        %v1109 = vpack.c.b16 %v995, %v989
        %v1110 = vpack.c.b16 %v996, %v990
        %v1111 = vpack.c.b16 %v997, %v991
        %v1112 = vpack.c.b16 %v998, %v992
        %v1113 = vpack.c.b16 %v999, %v993
        %v1114 = vpack.c.b16 %v1006, %v1000
        %v1115 = vpack.c.b16 %v1007, %v1001
        %v1116 = vpack.c.b16 %v1008, %v1002
        %v1117 = vpack.c.b16 %v1009, %v1003
        %v1118 = vpack.c.b16 %v1010, %v1004
        %v1119 = vpack.c.b16 %v1011, %v1005
        %v1120 = vpack.c.b16 %v1018, %v1012
        %v1121 = vpack.c.b16 %v1019, %v1013
        %v1122 = vpack.c.b16 %v1020, %v1014
        %v1123 = vpack.c.b16 %v1021, %v1015
        %v1124 = vpack.c.b16 %v1022, %v1016
        %v1125 = vpack.c.b16 %v1023, %v1017
        %v1126 = vpack.c.b16 %v1030, %v1024
        %v1127 = vpack.c.b16 %v1031, %v1025
        %v1128 = vpack.c.b16 %v1032, %v1026
        %v1129 = vpack.c.b16 %v1033, %v1027
        %v1130 = vpack.c.b16 %v1034, %v1028
        %v1131 = vpack.c.b16 %v1035, %v1029
        %1228 = vmatpush.bf16.msra.mxu0 %v1078
        %1229 = vmatpush.bf16.msra.mxu0 %v1072
        %1230 = vmatpush.bf16.msra.mxu0 %v1066
        %1231 = vmatpush.bf16.msra.mxu0 %v1060
        %1232 = vmatpush.bf16.msra.mxu0 %v1054
        %1233 = vmatpush.bf16.msra.mxu0 %v1048
        %1234 = vmatpush.bf16.msra.mxu0 %v1042
        %1235 = vmatpush.bf16.msra.mxu0 %v1036
        %1236 = vmatmul.bf16.gmra.mxu0 %v636
        %v1237 = vpop.f32.mrf.mxu0
        %v1238 = vadd.f32 %v736, %v1237
        %v1239 = vpop.f32.mrf.mxu0
        %v1240 = vadd.f32 %v736, %v1239
        %1241 = vdwg.mxu0
        %1242 = vmatpush.bf16.msra.mxu0 %v1126
        %1243 = vmatpush.bf16.msra.mxu0 %v1120
        %1244 = vmatpush.bf16.msra.mxu0 %v1114
        %1245 = vmatpush.bf16.msra.mxu0 %v1108
        %1246 = vmatpush.bf16.msra.mxu0 %v1102
        %1247 = vmatpush.bf16.msra.mxu0 %v1096
        %1248 = vmatpush.bf16.msra.mxu0 %v1090
        %1249 = vmatpush.bf16.msra.mxu0 %v1084
        %1250 = vmatmul.bf16.gmra.mxu0 %v637
        %v1251 = vpop.f32.mrf.mxu0
        %v1252 = vadd.f32 %v1238, %v1251
        %v1253 = vpop.f32.mrf.mxu0
        %v1254 = vadd.f32 %v1240, %v1253
        %1255 = vdwg.mxu0
        %1256 = vmatpush.bf16.msra.mxu0 %v1079
        %1257 = vmatpush.bf16.msra.mxu0 %v1073
        %1258 = vmatpush.bf16.msra.mxu0 %v1067
        %1259 = vmatpush.bf16.msra.mxu0 %v1061
        %1260 = vmatpush.bf16.msra.mxu0 %v1055
        %1261 = vmatpush.bf16.msra.mxu0 %v1049
        %1262 = vmatpush.bf16.msra.mxu0 %v1043
        %1263 = vmatpush.bf16.msra.mxu0 %v1037
        %1264 = vmatmul.bf16.gmra.mxu0 %v636
        %v1265 = vpop.f32.mrf.mxu0
        %v1266 = vadd.f32 %v737, %v1265
        %v1267 = vpop.f32.mrf.mxu0
        %v1268 = vadd.f32 %v737, %v1267
        %1269 = vdwg.mxu0
        %1270 = vmatpush.bf16.msra.mxu0 %v1127
        %1271 = vmatpush.bf16.msra.mxu0 %v1121
        %1272 = vmatpush.bf16.msra.mxu0 %v1115
        %1273 = vmatpush.bf16.msra.mxu0 %v1109
        %1274 = vmatpush.bf16.msra.mxu0 %v1103
        %1275 = vmatpush.bf16.msra.mxu0 %v1097
        %1276 = vmatpush.bf16.msra.mxu0 %v1091
        %1277 = vmatpush.bf16.msra.mxu0 %v1085
        %1278 = vmatmul.bf16.gmra.mxu0 %v637
        %v1279 = vpop.f32.mrf.mxu0
        %v1280 = vadd.f32 %v1266, %v1279
        %v1281 = vpop.f32.mrf.mxu0
        %v1282 = vadd.f32 %v1268, %v1281
        %1283 = vdwg.mxu0
        %1284 = vmatpush.bf16.msra.mxu0 %v1080
        %1285 = vmatpush.bf16.msra.mxu0 %v1074
        %1286 = vmatpush.bf16.msra.mxu0 %v1068
        %1287 = vmatpush.bf16.msra.mxu0 %v1062
        %1288 = vmatpush.bf16.msra.mxu0 %v1056
        %1289 = vmatpush.bf16.msra.mxu0 %v1050
        %1290 = vmatpush.bf16.msra.mxu0 %v1044
        %1291 = vmatpush.bf16.msra.mxu0 %v1038
        %1292 = vmatmul.bf16.gmra.mxu0 %v636
        %v1293 = vpop.f32.mrf.mxu0
        %v1294 = vadd.f32 %v738, %v1293
        %v1295 = vpop.f32.mrf.mxu0
        %v1296 = vadd.f32 %v738, %v1295
        %1297 = vdwg.mxu0
        %1298 = vmatpush.bf16.msra.mxu0 %v1128
        %1299 = vmatpush.bf16.msra.mxu0 %v1122
        %1300 = vmatpush.bf16.msra.mxu0 %v1116
        %1301 = vmatpush.bf16.msra.mxu0 %v1110
        %1302 = vmatpush.bf16.msra.mxu0 %v1104
        %1303 = vmatpush.bf16.msra.mxu0 %v1098
        %1304 = vmatpush.bf16.msra.mxu0 %v1092
        %1305 = vmatpush.bf16.msra.mxu0 %v1086
        %1306 = vmatmul.bf16.gmra.mxu0 %v637
        %v1307 = vpop.f32.mrf.mxu0
        %v1308 = vadd.f32 %v1294, %v1307
        %v1309 = vpop.f32.mrf.mxu0
        %v1310 = vadd.f32 %v1296, %v1309
        %1311 = vdwg.mxu0
        %1312 = vmatpush.bf16.msra.mxu0 %v1081
        %1313 = vmatpush.bf16.msra.mxu0 %v1075
        %1314 = vmatpush.bf16.msra.mxu0 %v1069
        %1315 = vmatpush.bf16.msra.mxu0 %v1063
        %1316 = vmatpush.bf16.msra.mxu0 %v1057
        %1317 = vmatpush.bf16.msra.mxu0 %v1051
        %1318 = vmatpush.bf16.msra.mxu0 %v1045
        %1319 = vmatpush.bf16.msra.mxu0 %v1039
        %1320 = vmatmul.bf16.gmra.mxu0 %v636
        %v1321 = vpop.f32.mrf.mxu0
        %v1322 = vadd.f32 %v739, %v1321
        %v1323 = vpop.f32.mrf.mxu0
        %v1324 = vadd.f32 %v739, %v1323
        %1325 = vdwg.mxu0
        %1326 = vmatpush.bf16.msra.mxu0 %v1129
        %1327 = vmatpush.bf16.msra.mxu0 %v1123
        %1328 = vmatpush.bf16.msra.mxu0 %v1117
        %1329 = vmatpush.bf16.msra.mxu0 %v1111
        %1330 = vmatpush.bf16.msra.mxu0 %v1105
        %1331 = vmatpush.bf16.msra.mxu0 %v1099
        %1332 = vmatpush.bf16.msra.mxu0 %v1093
        %1333 = vmatpush.bf16.msra.mxu0 %v1087
        %1334 = vmatmul.bf16.gmra.mxu0 %v637
        %v1335 = vpop.f32.mrf.mxu0
        %v1336 = vadd.f32 %v1322, %v1335
        %v1337 = vpop.f32.mrf.mxu0
        %v1338 = vadd.f32 %v1324, %v1337
        %1339 = vdwg.mxu0
        %1340 = vmatpush.bf16.msra.mxu0 %v1082
        %1341 = vmatpush.bf16.msra.mxu0 %v1076
        %1342 = vmatpush.bf16.msra.mxu0 %v1070
        %1343 = vmatpush.bf16.msra.mxu0 %v1064
        %1344 = vmatpush.bf16.msra.mxu0 %v1058
        %1345 = vmatpush.bf16.msra.mxu0 %v1052
        %1346 = vmatpush.bf16.msra.mxu0 %v1046
        %1347 = vmatpush.bf16.msra.mxu0 %v1040
        %1348 = vmatmul.bf16.gmra.mxu0 %v636
        %v1349 = vpop.f32.mrf.mxu0
        %v1350 = vadd.f32 %v740, %v1349
        %v1351 = vpop.f32.mrf.mxu0
        %v1352 = vadd.f32 %v740, %v1351
        %1353 = vdwg.mxu0
        %1354 = vmatpush.bf16.msra.mxu0 %v1130
        %1355 = vmatpush.bf16.msra.mxu0 %v1124
        %1356 = vmatpush.bf16.msra.mxu0 %v1118
        %1357 = vmatpush.bf16.msra.mxu0 %v1112
        %1358 = vmatpush.bf16.msra.mxu0 %v1106
        %1359 = vmatpush.bf16.msra.mxu0 %v1100
        %1360 = vmatpush.bf16.msra.mxu0 %v1094
        %1361 = vmatpush.bf16.msra.mxu0 %v1088
        %1362 = vmatmul.bf16.gmra.mxu0 %v637
        %v1363 = vpop.f32.mrf.mxu0
        %v1364 = vadd.f32 %v1350, %v1363
        %v1365 = vpop.f32.mrf.mxu0
        %v1366 = vadd.f32 %v1352, %v1365
        %1367 = vdwg.mxu0
        %1368 = vmatpush.bf16.msra.mxu0 %v1083
        %1369 = vmatpush.bf16.msra.mxu0 %v1077
        %1370 = vmatpush.bf16.msra.mxu0 %v1071
        %1371 = vmatpush.bf16.msra.mxu0 %v1065
        %1372 = vmatpush.bf16.msra.mxu0 %v1059
        %1373 = vmatpush.bf16.msra.mxu0 %v1053
        %1374 = vmatpush.bf16.msra.mxu0 %v1047
        %1375 = vmatpush.bf16.msra.mxu0 %v1041
        %1376 = vmatmul.bf16.gmra.mxu0 %v636
        %v1377 = vpop.f32.mrf.mxu0
        %v1378 = vadd.f32 %v741, %v1377
        %v1379 = vpop.f32.mrf.mxu0
        %v1380 = vadd.f32 %v741, %v1379
        %1381 = vdwg.mxu0
        %1382 = vmatpush.bf16.msra.mxu0 %v1131
        %1383 = vmatpush.bf16.msra.mxu0 %v1125
        %1384 = vmatpush.bf16.msra.mxu0 %v1119
        %1385 = vmatpush.bf16.msra.mxu0 %v1113
        %1386 = vmatpush.bf16.msra.mxu0 %v1107
        %1387 = vmatpush.bf16.msra.mxu0 %v1101
        %1388 = vmatpush.bf16.msra.mxu0 %v1095
        %1389 = vmatpush.bf16.msra.mxu0 %v1089
        %1390 = vmatmul.bf16.gmra.mxu0 %v637
        %v1391 = vpop.f32.mrf.mxu0
        %v1392 = vadd.f32 %v1378, %v1391
        %v1393 = vpop.f32.mrf.mxu0
        %v1394 = vadd.f32 %v1380, %v1393
        %1395 = vdwg.mxu0
        %v1396 = vld [vmem:[#allocation11] sm:$0xff]
        %v1397 = vld [vmem:[#allocation11 + $0x8] sm:$0xff]
        %v1398 = vld [vmem:[#allocation11 + $0x10] sm:$0xff]
        %v1399 = vld [vmem:[#allocation11 + $0x18] sm:$0xff]
        %v1400 = vld [vmem:[#allocation13] sm:$0xff]
        %v1401 = vld [vmem:[#allocation13 + $0x8] sm:$0xff]
        %v1402 = vld [vmem:[#allocation13 + $0x10] sm:$0xff]
        %v1403 = vld [vmem:[#allocation13 + $0x18] sm:$0xff]
        %v1404 = vld [vmem:[#allocation10] sm:$0xff]
        %v1405 = vld [vmem:[#allocation10 + $0x8] sm:$0xff]
        %v1406 = vld [vmem:[#allocation10 + $0x10] sm:$0xff]
        %v1407 = vld [vmem:[#allocation10 + $0x18] sm:$0xff]
        %v1408 = vld [vmem:[#allocation10 + $0x20] sm:$0xff]
        %v1409 = vld [vmem:[#allocation10 + $0x28] sm:$0xff]
        %v1410 = vld [vmem:[#allocation10 + $0x30] sm:$0xff]
        %v1411 = vld [vmem:[#allocation10 + $0x38] sm:$0xff]
        %v1412 = vld [vmem:[#allocation10 + $0x40] sm:$0xff]
        %v1413 = vld [vmem:[#allocation10 + $0x48] sm:$0xff]
        %v1414 = vld [vmem:[#allocation10 + $0x50] sm:$0xff]
        %v1415 = vld [vmem:[#allocation10 + $0x58] sm:$0xff]
        %v1416 = vld [vmem:[#allocation10 + $0x60] sm:$0xff]
        %v1417 = vld [vmem:[#allocation10 + $0x68] sm:$0xff]
        %v1418 = vld [vmem:[#allocation10 + $0x70] sm:$0xff]
        %v1419 = vld [vmem:[#allocation10 + $0x78] sm:$0xff]
        %v1420 = vld [vmem:[#allocation10 + $0x80] sm:$0xff]
        %v1421 = vld [vmem:[#allocation10 + $0x88] sm:$0xff]
        %v1422 = vld [vmem:[#allocation10 + $0x90] sm:$0xff]
        %v1423 = vld [vmem:[#allocation10 + $0x98] sm:$0xff]
        %v1424 = vld [vmem:[#allocation10 + $0xa0] sm:$0xff]
        %v1425 = vld [vmem:[#allocation10 + $0xa8] sm:$0xff]
        %v1426 = vld [vmem:[#allocation10 + $0xb0] sm:$0xff]
        %v1427 = vld [vmem:[#allocation10 + $0xb8] sm:$0xff]
        %v1428 = vld [vmem:[#allocation10 + $0xc0] sm:$0xff]
        %v1429 = vld [vmem:[#allocation10 + $0xc8] sm:$0xff]
        %v1430 = vld [vmem:[#allocation10 + $0xd0] sm:$0xff]
        %v1431 = vld [vmem:[#allocation10 + $0xd8] sm:$0xff]
        %v1432 = vld [vmem:[#allocation10 + $0xe0] sm:$0xff]
        %v1433 = vld [vmem:[#allocation10 + $0xe8] sm:$0xff]
        %v1434 = vld [vmem:[#allocation10 + $0xf0] sm:$0xff]
        %v1435 = vld [vmem:[#allocation10 + $0xf8] sm:$0xff]
        %v1436 = vmul.f32 %v1252, %v1396
        %v1437 = vmul.f32 %v1280, %v1397
        %v1438 = vmul.f32 %v1254, %v1398
        %v1439 = vmul.f32 %v1282, %v1399
        %v1440 = vpack.c.bf16 %v1254, %v1252
        %v1441 = vpack.c.bf16 %v1282, %v1280
        %v1474 = vunpack.c.l.b16 %v1404
        %v1475 = vunpack.c.h.b16 %v1404
        %v1476 = vunpack.c.l.b16 %v1405
        %v1477 = vunpack.c.h.b16 %v1405
        %v1478 = vunpack.c.l.b16 %v1406
        %v1479 = vunpack.c.h.b16 %v1406
        %v1480 = vunpack.c.l.b16 %v1407
        %v1481 = vunpack.c.h.b16 %v1407
        %v1482 = vunpack.c.l.b16 %v1408
        %v1483 = vunpack.c.h.b16 %v1408
        %v1484 = vunpack.c.l.b16 %v1409
        %v1485 = vunpack.c.h.b16 %v1409
        %v1486 = vunpack.c.l.b16 %v1410
        %v1487 = vunpack.c.h.b16 %v1410
        %v1488 = vunpack.c.l.b16 %v1411
        %v1489 = vunpack.c.h.b16 %v1411
        %v1490 = vunpack.c.l.b16 %v1412
        %v1491 = vunpack.c.h.b16 %v1412
        %v1492 = vunpack.c.l.b16 %v1413
        %v1493 = vunpack.c.h.b16 %v1413
        %v1494 = vunpack.c.l.b16 %v1414
        %v1495 = vunpack.c.h.b16 %v1414
        %v1496 = vunpack.c.l.b16 %v1415
        %v1497 = vunpack.c.h.b16 %v1415
        %v1498 = vunpack.c.l.b16 %v1416
        %v1499 = vunpack.c.h.b16 %v1416
        %v1500 = vunpack.c.l.b16 %v1417
        %v1501 = vunpack.c.h.b16 %v1417
        %v1502 = vunpack.c.l.b16 %v1418
        %v1503 = vunpack.c.h.b16 %v1418
        %v1504 = vunpack.c.l.b16 %v1419
        %v1505 = vunpack.c.h.b16 %v1419
        %v1506 = vunpack.c.l.b16 %v1420
        %v1507 = vunpack.c.h.b16 %v1420
        %v1508 = vunpack.c.l.b16 %v1421
        %v1509 = vunpack.c.h.b16 %v1421
        %v1510 = vunpack.c.l.b16 %v1422
        %v1511 = vunpack.c.h.b16 %v1422
        %v1512 = vunpack.c.l.b16 %v1423
        %v1513 = vunpack.c.h.b16 %v1423
        %v1514 = vunpack.c.l.b16 %v1424
        %v1515 = vunpack.c.h.b16 %v1424
        %v1516 = vunpack.c.l.b16 %v1425
        %v1517 = vunpack.c.h.b16 %v1425
        %v1518 = vunpack.c.l.b16 %v1426
        %v1519 = vunpack.c.h.b16 %v1426
        %v1520 = vunpack.c.l.b16 %v1427
        %v1521 = vunpack.c.h.b16 %v1427
        %v1522 = vunpack.c.l.b16 %v1428
        %v1523 = vunpack.c.h.b16 %v1428
        %v1524 = vunpack.c.l.b16 %v1429
        %v1525 = vunpack.c.h.b16 %v1429
        %v1526 = vunpack.c.l.b16 %v1430
        %v1527 = vunpack.c.h.b16 %v1430
        %v1528 = vunpack.c.l.b16 %v1431
        %v1529 = vunpack.c.h.b16 %v1431
        %v1530 = vunpack.c.l.b16 %v1432
        %v1531 = vunpack.c.h.b16 %v1432
        %v1532 = vunpack.c.l.b16 %v1433
        %v1533 = vunpack.c.h.b16 %v1433
        %v1534 = vunpack.c.l.b16 %v1434
        %v1535 = vunpack.c.h.b16 %v1434
        %v1536 = vunpack.c.l.b16 %v1435
        %v1537 = vunpack.c.h.b16 %v1435
        %v1538 = vpack.c.b16 %v1476, %v1474
        %v1539 = vpack.c.b16 %v1477, %v1475
        %v1540 = vpack.c.b16 %v1480, %v1478
        %v1541 = vpack.c.b16 %v1481, %v1479
        %v1542 = vpack.c.b16 %v1484, %v1482
        %v1543 = vpack.c.b16 %v1485, %v1483
        %v1544 = vpack.c.b16 %v1488, %v1486
        %v1545 = vpack.c.b16 %v1489, %v1487
        %v1546 = vpack.c.b16 %v1492, %v1490
        %v1547 = vpack.c.b16 %v1493, %v1491
        %v1548 = vpack.c.b16 %v1496, %v1494
        %v1549 = vpack.c.b16 %v1497, %v1495
        %v1550 = vpack.c.b16 %v1500, %v1498
        %v1551 = vpack.c.b16 %v1501, %v1499
        %v1552 = vpack.c.b16 %v1504, %v1502
        %v1553 = vpack.c.b16 %v1505, %v1503
        %v1554 = vpack.c.b16 %v1508, %v1506
        %v1555 = vpack.c.b16 %v1509, %v1507
        %v1556 = vpack.c.b16 %v1512, %v1510
        %v1557 = vpack.c.b16 %v1513, %v1511
        %v1558 = vpack.c.b16 %v1516, %v1514
        %v1559 = vpack.c.b16 %v1517, %v1515
        %v1560 = vpack.c.b16 %v1520, %v1518
        %v1561 = vpack.c.b16 %v1521, %v1519
        %v1562 = vpack.c.b16 %v1524, %v1522
        %v1563 = vpack.c.b16 %v1525, %v1523
        %v1564 = vpack.c.b16 %v1528, %v1526
        %v1565 = vpack.c.b16 %v1529, %v1527
        %v1566 = vpack.c.b16 %v1532, %v1530
        %v1567 = vpack.c.b16 %v1533, %v1531
        %v1568 = vpack.c.b16 %v1536, %v1534
        %v1569 = vpack.c.b16 %v1537, %v1535
        %1602 = vmatpush.bf16.msra.mxu0 %v1552
        %1603 = vmatpush.bf16.msra.mxu0 %v1550
        %1604 = vmatpush.bf16.msra.mxu0 %v1548
        %1605 = vmatpush.bf16.msra.mxu0 %v1546
        %1606 = vmatpush.bf16.msra.mxu0 %v1544
        %1607 = vmatpush.bf16.msra.mxu0 %v1542
        %1608 = vmatpush.bf16.msra.mxu0 %v1540
        %1609 = vmatpush.bf16.msra.mxu0 %v1538
        %1610 = vmatmul.bf16.gmra.mxu0 %v1440
        %v1611 = vpop.f32.mrf.mxu0
        %v1612 = vadd.f32 0.0, %v1611
        %v1613 = vpop.f32.mrf.mxu0
        %v1614 = vadd.f32 0.0, %v1613
        %1615 = vdwg.mxu0
        %1616 = vmatpush.bf16.msra.mxu0 %v1568
        %1617 = vmatpush.bf16.msra.mxu0 %v1566
        %1618 = vmatpush.bf16.msra.mxu0 %v1564
        %1619 = vmatpush.bf16.msra.mxu0 %v1562
        %1620 = vmatpush.bf16.msra.mxu0 %v1560
        %1621 = vmatpush.bf16.msra.mxu0 %v1558
        %1622 = vmatpush.bf16.msra.mxu0 %v1556
        %1623 = vmatpush.bf16.msra.mxu0 %v1554
        %1624 = vmatmul.bf16.gmra.mxu0 %v1441
        %v1625 = vpop.f32.mrf.mxu0
        %v1626 = vadd.f32 %v1612, %v1625
        %v1627 = vpop.f32.mrf.mxu0
        %v1628 = vadd.f32 %v1614, %v1627
        %1629 = vdwg.mxu0
        %1630 = vmatpush.bf16.msra.mxu0 %v1553
        %1631 = vmatpush.bf16.msra.mxu0 %v1551
        %1632 = vmatpush.bf16.msra.mxu0 %v1549
        %1633 = vmatpush.bf16.msra.mxu0 %v1547
        %1634 = vmatpush.bf16.msra.mxu0 %v1545
        %1635 = vmatpush.bf16.msra.mxu0 %v1543
        %1636 = vmatpush.bf16.msra.mxu0 %v1541
        %1637 = vmatpush.bf16.msra.mxu0 %v1539
        %1638 = vmatmul.bf16.gmra.mxu0 %v1440
        %v1639 = vpop.f32.mrf.mxu0
        %v1640 = vadd.f32 0.0, %v1639
        %v1641 = vpop.f32.mrf.mxu0
        %v1642 = vadd.f32 0.0, %v1641
        %1643 = vdwg.mxu0
        %1644 = vmatpush.bf16.msra.mxu0 %v1569
        %1645 = vmatpush.bf16.msra.mxu0 %v1567
        %1646 = vmatpush.bf16.msra.mxu0 %v1565
        %1647 = vmatpush.bf16.msra.mxu0 %v1563
        %1648 = vmatpush.bf16.msra.mxu0 %v1561
        %1649 = vmatpush.bf16.msra.mxu0 %v1559
        %1650 = vmatpush.bf16.msra.mxu0 %v1557
        %1651 = vmatpush.bf16.msra.mxu0 %v1555
        %1652 = vmatmul.bf16.gmra.mxu0 %v1441
        %v1653 = vpop.f32.mrf.mxu0
        %v1654 = vadd.f32 %v1640, %v1653
        %v1655 = vpop.f32.mrf.mxu0
        %v1656 = vadd.f32 %v1642, %v1655
        %1657 = vdwg.mxu0
        %v1658 = vmul.f32 %v1626, %v1400
        %v1659 = vmul.f32 %v1654, %v1401
        %v1660 = vmul.f32 %v1628, %v1402
        %v1661 = vmul.f32 %v1656, %v1403
        %v1662 = vadd.f32 %v1436, %v1658
        %v1663 = vadd.f32 %v1437, %v1659
        %v1664 = vadd.f32 %v1438, %v1660
        %v1665 = vadd.f32 %v1439, %v1661
        %v1666 = vmul.f32 %v1308, %v1396
        %v1667 = vmul.f32 %v1336, %v1397
        %v1668 = vmul.f32 %v1310, %v1398
        %v1669 = vmul.f32 %v1338, %v1399
        %v1670 = vpack.c.bf16 %v1310, %v1308
        %v1671 = vpack.c.bf16 %v1338, %v1336
        %1672 = vmatpush.bf16.msra.mxu0 %v1552
        %1673 = vmatpush.bf16.msra.mxu0 %v1550
        %1674 = vmatpush.bf16.msra.mxu0 %v1548
        %1675 = vmatpush.bf16.msra.mxu0 %v1546
        %1676 = vmatpush.bf16.msra.mxu0 %v1544
        %1677 = vmatpush.bf16.msra.mxu0 %v1542
        %1678 = vmatpush.bf16.msra.mxu0 %v1540
        %1679 = vmatpush.bf16.msra.mxu0 %v1538
        %1680 = vmatmul.bf16.gmra.mxu0 %v1670
        %v1681 = vpop.f32.mrf.mxu0
        %v1682 = vadd.f32 0.0, %v1681
        %v1683 = vpop.f32.mrf.mxu0
        %v1684 = vadd.f32 0.0, %v1683
        %1685 = vdwg.mxu0
        %1686 = vmatpush.bf16.msra.mxu0 %v1568
        %1687 = vmatpush.bf16.msra.mxu0 %v1566
        %1688 = vmatpush.bf16.msra.mxu0 %v1564
        %1689 = vmatpush.bf16.msra.mxu0 %v1562
        %1690 = vmatpush.bf16.msra.mxu0 %v1560
        %1691 = vmatpush.bf16.msra.mxu0 %v1558
        %1692 = vmatpush.bf16.msra.mxu0 %v1556
        %1693 = vmatpush.bf16.msra.mxu0 %v1554
        %1694 = vmatmul.bf16.gmra.mxu0 %v1671
        %v1695 = vpop.f32.mrf.mxu0
        %v1696 = vadd.f32 %v1682, %v1695
        %v1697 = vpop.f32.mrf.mxu0
        %v1698 = vadd.f32 %v1684, %v1697
        %1699 = vdwg.mxu0
        %1700 = vmatpush.bf16.msra.mxu0 %v1553
        %1701 = vmatpush.bf16.msra.mxu0 %v1551
        %1702 = vmatpush.bf16.msra.mxu0 %v1549
        %1703 = vmatpush.bf16.msra.mxu0 %v1547
        %1704 = vmatpush.bf16.msra.mxu0 %v1545
        %1705 = vmatpush.bf16.msra.mxu0 %v1543
        %1706 = vmatpush.bf16.msra.mxu0 %v1541
        %1707 = vmatpush.bf16.msra.mxu0 %v1539
        %1708 = vmatmul.bf16.gmra.mxu0 %v1670
        %v1709 = vpop.f32.mrf.mxu0
        %v1710 = vadd.f32 0.0, %v1709
        %v1711 = vpop.f32.mrf.mxu0
        %v1712 = vadd.f32 0.0, %v1711
        %1713 = vdwg.mxu0
        %1714 = vmatpush.bf16.msra.mxu0 %v1569
        %1715 = vmatpush.bf16.msra.mxu0 %v1567
        %1716 = vmatpush.bf16.msra.mxu0 %v1565
        %1717 = vmatpush.bf16.msra.mxu0 %v1563
        %1718 = vmatpush.bf16.msra.mxu0 %v1561
        %1719 = vmatpush.bf16.msra.mxu0 %v1559
        %1720 = vmatpush.bf16.msra.mxu0 %v1557
        %1721 = vmatpush.bf16.msra.mxu0 %v1555
        %1722 = vmatmul.bf16.gmra.mxu0 %v1671
        %v1723 = vpop.f32.mrf.mxu0
        %v1724 = vadd.f32 %v1710, %v1723
        %v1725 = vpop.f32.mrf.mxu0
        %v1726 = vadd.f32 %v1712, %v1725
        %1727 = vdwg.mxu0
        %v1728 = vmul.f32 %v1696, %v1400
        %v1729 = vmul.f32 %v1724, %v1401
        %v1730 = vmul.f32 %v1698, %v1402
        %v1731 = vmul.f32 %v1726, %v1403
        %v1732 = vadd.f32 %v1666, %v1728
        %v1733 = vadd.f32 %v1667, %v1729
        %v1734 = vadd.f32 %v1668, %v1730
        %v1735 = vadd.f32 %v1669, %v1731
        %v1736 = vld [vmem:[#allocation14] sm:$0xff]
        %v1737 = vld [vmem:[#allocation14 + $0x8] sm:$0xff]
        %v1738 = vpack.c.bf16 %v1664, %v1662
        %v1739 = vpack.c.bf16 %v1734, %v1732
        %v1740 = vpack.c.bf16 %v1366, %v1364
        %vm1741 = vcmask 523264
        %v1743 = vsel %vm1741, %v1738, 0
        %v1746 = vsel %vm1741, %v1739, 0
        %1748 = vmatpush.bf16.xpose.msra.mxu0 0
        %1749 = vmatpush.bf16.xpose.msra.mxu0 0
        %1750 = vmatpush.bf16.xpose.msra.mxu0 0
        %1751 = vmatpush.bf16.xpose.msra.mxu0 0
        %1752 = vmatpush.bf16.xpose.msra.mxu0 0
        %1753 = vmatpush.bf16.xpose.msra.mxu0 0
        %1754 = vmatpush.bf16.xpose.msra.mxu0 0
        %1755 = vmatpush.bf16.xpose.msra.mxu0 %v1746
        %1756 = vmatmul.bf16.gmra.mxu0 %v1743
        %v1757 = vpop.f32.mrf.mxu0
        %v1758 = vadd.f32 0.0, %v1757
        %v1759 = vpop.f32.mrf.mxu0
        %v1760 = vadd.f32 0.0, %v1759
        %1761 = vdwg.mxu0
        %v1762 = vmul.f32 %v1758, 0.125
        %v1763 = vmul.f32 %v1760, 0.125
        %v1764 = vadd.f32 %v1762, %v1736
        %v1765 = vadd.f32 %v1763, %v1737
        %v1766 = vsel %vm559, %v1764, -inf
        %1767 = vmax.xlane.f32.xlu0 %v1766
        %v1768 = vpop.xlane.xlu0 %1767
        %v1769 = vsel %vm559, %v1765, -inf
        %1770 = vmax.xlane.f32.xlu0 %v1769
        %v1771 = vpop.xlane.xlu0 %1770
        %v1772 = vsub.f32 %v1764, %v1768
        %v1773 = vsub.f32 %v1765, %v1771
        %v1774 = vmul.f32 %v1772, 1.442695
        %v1775 = vpow.pop %v1774
        %v1776 = vmul.f32 %v1773, 1.442695
        %v1777 = vpow.pop %v1776
        %v1778 = vsel %vm559, %v1775, 0.0
        %1779 = vadd.xlane.f32.xlu0 %v1778
        %v1780 = vpop.xlane.xlu0 %1779
        %v1781 = vsel %vm559, %v1777, 0.0
        %1782 = vadd.xlane.f32.xlu0 %v1781
        %v1783 = vpop.xlane.xlu0 %1782
        %v1784 = vrcp.pop %v1780
        %v1785 = vrcp.pop %v1783
        %v1786 = vmul.f32 %v1775, %v1784
        %v1787 = vmul.f32 %v1777, %v1785
        %v1788 = vpack.c.bf16 %v1787, %v1786
        %v1790 = vsel %vm559, %v1788, 0
        %1792 = vmatpush.bf16.msra.mxu0 0
        %1793 = vmatpush.bf16.msra.mxu0 0
        %1794 = vmatpush.bf16.msra.mxu0 0
        %1795 = vmatpush.bf16.msra.mxu0 0
        %1796 = vmatpush.bf16.msra.mxu0 0
        %1797 = vmatpush.bf16.msra.mxu0 0
        %1798 = vmatpush.bf16.msra.mxu0 0
        %1799 = vmatpush.bf16.msra.mxu0 %v1740
        %1800 = vmatmul.bf16.gmra.mxu0 %v1790
        %v1801 = vpop.f32.mrf.mxu0
        %v1802 = vadd.f32 0.0, %v1801
        %v1803 = vpop.f32.mrf.mxu0
        %v1804 = vadd.f32 0.0, %v1803
        %1805 = vdwg.mxu0
        %v1806 = vpack.c.bf16 %v1804, %v1802
        %v1807 = vld [vmem:[#allocation16] sm:$0xff]
        %v1808 = vld [vmem:[#allocation16 + $0x8] sm:$0xff]
        %v1809 = vld [vmem:[#allocation16 + $0x10] sm:$0xff]
        %v1810 = vld [vmem:[#allocation16 + $0x18] sm:$0xff]
        %v1811 = vld [vmem:[#allocation16 + $0x20] sm:$0xff]
        %v1812 = vld [vmem:[#allocation16 + $0x28] sm:$0xff]
        %v1813 = vld [vmem:[#allocation16 + $0x30] sm:$0xff]
        %v1814 = vld [vmem:[#allocation16 + $0x38] sm:$0xff]
        %1816 = vrot.lane.b32.xlu0 %v1738, 64
        %v1817 = vpop.permute.xlu0 %1816
        %1819 = vrot.lane.b32.xlu0 %v1739, 64
        %v1820 = vpop.permute.xlu0 %1819
        %v1822 = vsel %vm1741, %v1817, 0
        %v1825 = vsel %vm1741, %v1820, 0
        %1827 = vmatpush.bf16.xpose.msra.mxu0 0
        %1828 = vmatpush.bf16.xpose.msra.mxu0 0
        %1829 = vmatpush.bf16.xpose.msra.mxu0 0
        %1830 = vmatpush.bf16.xpose.msra.mxu0 0
        %1831 = vmatpush.bf16.xpose.msra.mxu0 0
        %1832 = vmatpush.bf16.xpose.msra.mxu0 0
        %1833 = vmatpush.bf16.xpose.msra.mxu0 0
        %1834 = vmatpush.bf16.xpose.msra.mxu0 %v1825
        %1835 = vmatmul.bf16.gmra.mxu0 %v1822
        %v1836 = vpop.f32.mrf.mxu0
        %v1837 = vadd.f32 0.0, %v1836
        %v1838 = vpop.f32.mrf.mxu0
        %v1839 = vadd.f32 0.0, %v1838
        %1840 = vdwg.mxu0
        %v1841 = vmul.f32 %v1837, 0.125
        %v1842 = vmul.f32 %v1839, 0.125
        %v1843 = vadd.f32 %v1841, %v1736
        %v1844 = vadd.f32 %v1842, %v1737
        %v1845 = vsel %vm559, %v1843, -inf
        %1846 = vmax.xlane.f32.xlu0 %v1845
        %v1847 = vpop.xlane.xlu0 %1846
        %v1848 = vsel %vm559, %v1844, -inf
        %1849 = vmax.xlane.f32.xlu0 %v1848
        %v1850 = vpop.xlane.xlu0 %1849
        %v1851 = vsub.f32 %v1843, %v1847
        %v1852 = vsub.f32 %v1844, %v1850
        %v1853 = vmul.f32 %v1851, 1.442695
        %v1854 = vpow.pop %v1853
        %v1855 = vmul.f32 %v1852, 1.442695
        %v1856 = vpow.pop %v1855
        %v1857 = vsel %vm559, %v1854, 0.0
        %1858 = vadd.xlane.f32.xlu0 %v1857
        %v1859 = vpop.xlane.xlu0 %1858
        %v1860 = vsel %vm559, %v1856, 0.0
        %1861 = vadd.xlane.f32.xlu0 %v1860
        %v1862 = vpop.xlane.xlu0 %1861
        %v1863 = vrcp.pop %v1859
        %v1864 = vrcp.pop %v1862
        %v1865 = vmul.f32 %v1854, %v1863
        %v1866 = vmul.f32 %v1856, %v1864
        %v1867 = vpack.c.bf16 %v1866, %v1865
        %1869 = vrot.lane.b32.xlu0 %v1740, 64
        %v1870 = vpop.permute.xlu0 %1869
        %v1873 = vsel %vm559, %v1867, 0
        %1875 = vmatpush.bf16.msra.mxu0 0
        %1876 = vmatpush.bf16.msra.mxu0 0
        %1877 = vmatpush.bf16.msra.mxu0 0
        %1878 = vmatpush.bf16.msra.mxu0 0
        %1879 = vmatpush.bf16.msra.mxu0 0
        %1880 = vmatpush.bf16.msra.mxu0 0
        %1881 = vmatpush.bf16.msra.mxu0 0
        %1882 = vmatpush.bf16.msra.mxu0 %v1870
        %1883 = vmatmul.bf16.gmra.mxu0 %v1873
        %v1884 = vpop.f32.mrf.mxu0
        %v1885 = vadd.f32 0.0, %v1884
        %v1886 = vpop.f32.mrf.mxu0
        %v1887 = vadd.f32 0.0, %v1886
        %1888 = vdwg.mxu0
        %v1889 = vpack.c.bf16 %v1887, %v1885
        %v1890 = vld [vmem:[#allocation16 + $0x40] sm:$0xff]
        %v1891 = vld [vmem:[#allocation16 + $0x48] sm:$0xff]
        %v1892 = vld [vmem:[#allocation16 + $0x50] sm:$0xff]
        %v1893 = vld [vmem:[#allocation16 + $0x58] sm:$0xff]
        %v1894 = vld [vmem:[#allocation16 + $0x60] sm:$0xff]
        %v1895 = vld [vmem:[#allocation16 + $0x68] sm:$0xff]
        %v1896 = vld [vmem:[#allocation16 + $0x70] sm:$0xff]
        %v1897 = vld [vmem:[#allocation16 + $0x78] sm:$0xff]
        %v1906 = vunpack.c.l.b16 %v1890
        %v1907 = vunpack.c.h.b16 %v1890
        %v1908 = vunpack.c.l.b16 %v1891
        %v1909 = vunpack.c.h.b16 %v1891
        %v1910 = vunpack.c.l.b16 %v1892
        %v1911 = vunpack.c.h.b16 %v1892
        %v1912 = vunpack.c.l.b16 %v1893
        %v1913 = vunpack.c.h.b16 %v1893
        %v1914 = vunpack.c.l.b16 %v1894
        %v1915 = vunpack.c.h.b16 %v1894
        %v1916 = vunpack.c.l.b16 %v1895
        %v1917 = vunpack.c.h.b16 %v1895
        %v1918 = vunpack.c.l.b16 %v1896
        %v1919 = vunpack.c.h.b16 %v1896
        %v1920 = vunpack.c.l.b16 %v1897
        %v1921 = vunpack.c.h.b16 %v1897
        %v1922 = vpack.c.b16 %v1908, %v1906
        %v1923 = vpack.c.b16 %v1909, %v1907
        %v1924 = vpack.c.b16 %v1912, %v1910
        %v1925 = vpack.c.b16 %v1913, %v1911
        %v1926 = vpack.c.b16 %v1916, %v1914
        %v1927 = vpack.c.b16 %v1917, %v1915
        %v1928 = vpack.c.b16 %v1920, %v1918
        %v1929 = vpack.c.b16 %v1921, %v1919
        %v1939 = vsel %vm1741, %v1889, 0
        %1941 = vmatpush.bf16.msra.mxu0 0
        %1942 = vmatpush.bf16.msra.mxu0 0
        %1943 = vmatpush.bf16.msra.mxu0 0
        %1944 = vmatpush.bf16.msra.mxu0 0
        %1945 = vmatpush.bf16.msra.mxu0 %v1928
        %1946 = vmatpush.bf16.msra.mxu0 %v1926
        %1947 = vmatpush.bf16.msra.mxu0 %v1924
        %1948 = vmatpush.bf16.msra.mxu0 %v1922
        %1949 = vmatmul.bf16.gmra.mxu0 %v1939
        %v1950 = vpop.f32.mrf.mxu0
        %v1951 = vadd.f32 0.0, %v1950
        %v1952 = vpop.f32.mrf.mxu0
        %v1953 = vadd.f32 0.0, %v1952
        %1954 = vdwg.mxu0
        %1955 = vmatpush.bf16.msra.mxu0 0
        %1956 = vmatpush.bf16.msra.mxu0 0
        %1957 = vmatpush.bf16.msra.mxu0 0
        %1958 = vmatpush.bf16.msra.mxu0 0
        %1959 = vmatpush.bf16.msra.mxu0 %v1929
        %1960 = vmatpush.bf16.msra.mxu0 %v1927
        %1961 = vmatpush.bf16.msra.mxu0 %v1925
        %1962 = vmatpush.bf16.msra.mxu0 %v1923
        %1963 = vmatmul.bf16.gmra.mxu0 %v1939
        %v1964 = vpop.f32.mrf.mxu0
        %v1965 = vadd.f32 0.0, %v1964
        %v1966 = vpop.f32.mrf.mxu0
        %v1967 = vadd.f32 0.0, %v1966
        %1968 = vdwg.mxu0
        %v1977 = vunpack.c.l.b16 %v1807
        %v1978 = vunpack.c.h.b16 %v1807
        %v1979 = vunpack.c.l.b16 %v1808
        %v1980 = vunpack.c.h.b16 %v1808
        %v1981 = vunpack.c.l.b16 %v1809
        %v1982 = vunpack.c.h.b16 %v1809
        %v1983 = vunpack.c.l.b16 %v1810
        %v1984 = vunpack.c.h.b16 %v1810
        %v1985 = vunpack.c.l.b16 %v1811
        %v1986 = vunpack.c.h.b16 %v1811
        %v1987 = vunpack.c.l.b16 %v1812
        %v1988 = vunpack.c.h.b16 %v1812
        %v1989 = vunpack.c.l.b16 %v1813
        %v1990 = vunpack.c.h.b16 %v1813
        %v1991 = vunpack.c.l.b16 %v1814
        %v1992 = vunpack.c.h.b16 %v1814
        %v1993 = vpack.c.b16 %v1979, %v1977
        %v1994 = vpack.c.b16 %v1980, %v1978
        %v1995 = vpack.c.b16 %v1983, %v1981
        %v1996 = vpack.c.b16 %v1984, %v1982
        %v1997 = vpack.c.b16 %v1987, %v1985
        %v1998 = vpack.c.b16 %v1988, %v1986
        %v1999 = vpack.c.b16 %v1991, %v1989
        %v2000 = vpack.c.b16 %v1992, %v1990
        %v2010 = vsel %vm1741, %v1806, 0
        %2012 = vmatpush.bf16.msra.mxu0 0
        %2013 = vmatpush.bf16.msra.mxu0 0
        %2014 = vmatpush.bf16.msra.mxu0 0
        %2015 = vmatpush.bf16.msra.mxu0 0
        %2016 = vmatpush.bf16.msra.mxu0 %v1999
        %2017 = vmatpush.bf16.msra.mxu0 %v1997
        %2018 = vmatpush.bf16.msra.mxu0 %v1995
        %2019 = vmatpush.bf16.msra.mxu0 %v1993
        %2020 = vmatmul.bf16.gmra.mxu0 %v2010
        %v2021 = vpop.f32.mrf.mxu0
        %v2022 = vadd.f32 %v1951, %v2021
        %v2023 = vpop.f32.mrf.mxu0
        %v2024 = vadd.f32 %v1953, %v2023
        %2025 = vdwg.mxu0
        %2026 = vmatpush.bf16.msra.mxu0 0
        %2027 = vmatpush.bf16.msra.mxu0 0
        %2028 = vmatpush.bf16.msra.mxu0 0
        %2029 = vmatpush.bf16.msra.mxu0 0
        %2030 = vmatpush.bf16.msra.mxu0 %v2000
        %2031 = vmatpush.bf16.msra.mxu0 %v1998
        %2032 = vmatpush.bf16.msra.mxu0 %v1996
        %2033 = vmatpush.bf16.msra.mxu0 %v1994
        %2034 = vmatmul.bf16.gmra.mxu0 %v2010
        %v2035 = vpop.f32.mrf.mxu0
        %v2036 = vadd.f32 %v1965, %v2035
        %v2037 = vpop.f32.mrf.mxu0
        %v2038 = vadd.f32 %v1967, %v2037
        %2039 = vdwg.mxu0
        %v2040 = vpack.c.bf16 %v1665, %v1663
        %v2041 = vpack.c.bf16 %v1735, %v1733
        %v2042 = vpack.c.bf16 %v1394, %v1392
        %v2044 = vsel %vm1741, %v2040, 0
        %v2047 = vsel %vm1741, %v2041, 0
        %2049 = vmatpush.bf16.xpose.msra.mxu0 0
        %2050 = vmatpush.bf16.xpose.msra.mxu0 0
        %2051 = vmatpush.bf16.xpose.msra.mxu0 0
        %2052 = vmatpush.bf16.xpose.msra.mxu0 0
        %2053 = vmatpush.bf16.xpose.msra.mxu0 0
        %2054 = vmatpush.bf16.xpose.msra.mxu0 0
        %2055 = vmatpush.bf16.xpose.msra.mxu0 0
        %2056 = vmatpush.bf16.xpose.msra.mxu0 %v2047
        %2057 = vmatmul.bf16.gmra.mxu0 %v2044
        %v2058 = vpop.f32.mrf.mxu0
        %v2059 = vadd.f32 0.0, %v2058
        %v2060 = vpop.f32.mrf.mxu0
        %v2061 = vadd.f32 0.0, %v2060
        %2062 = vdwg.mxu0
        %v2063 = vmul.f32 %v2059, 0.125
        %v2064 = vmul.f32 %v2061, 0.125
        %v2065 = vadd.f32 %v2063, %v1736
        %v2066 = vadd.f32 %v2064, %v1737
        %v2067 = vsel %vm559, %v2065, -inf
        %2068 = vmax.xlane.f32.xlu0 %v2067
        %v2069 = vpop.xlane.xlu0 %2068
        %v2070 = vsel %vm559, %v2066, -inf
        %2071 = vmax.xlane.f32.xlu0 %v2070
        %v2072 = vpop.xlane.xlu0 %2071
        %v2073 = vsub.f32 %v2065, %v2069
        %v2074 = vsub.f32 %v2066, %v2072
        %v2075 = vmul.f32 %v2073, 1.442695
        %v2076 = vpow.pop %v2075
        %v2077 = vmul.f32 %v2074, 1.442695
        %v2078 = vpow.pop %v2077
        %v2079 = vsel %vm559, %v2076, 0.0
        %2080 = vadd.xlane.f32.xlu0 %v2079
        %v2081 = vpop.xlane.xlu0 %2080
        %v2082 = vsel %vm559, %v2078, 0.0
        %2083 = vadd.xlane.f32.xlu0 %v2082
        %v2084 = vpop.xlane.xlu0 %2083
        %v2085 = vrcp.pop %v2081
        %v2086 = vrcp.pop %v2084
        %v2087 = vmul.f32 %v2076, %v2085
        %v2088 = vmul.f32 %v2078, %v2086
        %v2089 = vpack.c.bf16 %v2088, %v2087
        %v2091 = vsel %vm559, %v2089, 0
        %2093 = vmatpush.bf16.msra.mxu0 0
        %2094 = vmatpush.bf16.msra.mxu0 0
        %2095 = vmatpush.bf16.msra.mxu0 0
        %2096 = vmatpush.bf16.msra.mxu0 0
        %2097 = vmatpush.bf16.msra.mxu0 0
        %2098 = vmatpush.bf16.msra.mxu0 0
        %2099 = vmatpush.bf16.msra.mxu0 0
        %2100 = vmatpush.bf16.msra.mxu0 %v2042
        %2101 = vmatmul.bf16.gmra.mxu0 %v2091
        %v2102 = vpop.f32.mrf.mxu0
        %v2103 = vadd.f32 0.0, %v2102
        %v2104 = vpop.f32.mrf.mxu0
        %v2105 = vadd.f32 0.0, %v2104
        %2106 = vdwg.mxu0
        %v2107 = vpack.c.bf16 %v2105, %v2103
        %v2108 = vld [vmem:[#allocation16 + $0x80] sm:$0xff]
        %v2109 = vld [vmem:[#allocation16 + $0x88] sm:$0xff]
        %v2110 = vld [vmem:[#allocation16 + $0x90] sm:$0xff]
        %v2111 = vld [vmem:[#allocation16 + $0x98] sm:$0xff]
        %v2112 = vld [vmem:[#allocation16 + $0xa0] sm:$0xff]
        %v2113 = vld [vmem:[#allocation16 + $0xa8] sm:$0xff]
        %v2114 = vld [vmem:[#allocation16 + $0xb0] sm:$0xff]
        %v2115 = vld [vmem:[#allocation16 + $0xb8] sm:$0xff]
        %v2124 = vunpack.c.l.b16 %v2108
        %v2125 = vunpack.c.h.b16 %v2108
        %v2126 = vunpack.c.l.b16 %v2109
        %v2127 = vunpack.c.h.b16 %v2109
        %v2128 = vunpack.c.l.b16 %v2110
        %v2129 = vunpack.c.h.b16 %v2110
        %v2130 = vunpack.c.l.b16 %v2111
        %v2131 = vunpack.c.h.b16 %v2111
        %v2132 = vunpack.c.l.b16 %v2112
        %v2133 = vunpack.c.h.b16 %v2112
        %v2134 = vunpack.c.l.b16 %v2113
        %v2135 = vunpack.c.h.b16 %v2113
        %v2136 = vunpack.c.l.b16 %v2114
        %v2137 = vunpack.c.h.b16 %v2114
        %v2138 = vunpack.c.l.b16 %v2115
        %v2139 = vunpack.c.h.b16 %v2115
        %v2140 = vpack.c.b16 %v2126, %v2124
        %v2141 = vpack.c.b16 %v2127, %v2125
        %v2142 = vpack.c.b16 %v2130, %v2128
        %v2143 = vpack.c.b16 %v2131, %v2129
        %v2144 = vpack.c.b16 %v2134, %v2132
        %v2145 = vpack.c.b16 %v2135, %v2133
        %v2146 = vpack.c.b16 %v2138, %v2136
        %v2147 = vpack.c.b16 %v2139, %v2137
        %v2157 = vsel %vm1741, %v2107, 0
        %2159 = vmatpush.bf16.msra.mxu0 0
        %2160 = vmatpush.bf16.msra.mxu0 0
        %2161 = vmatpush.bf16.msra.mxu0 0
        %2162 = vmatpush.bf16.msra.mxu0 0
        %2163 = vmatpush.bf16.msra.mxu0 %v2146
        %2164 = vmatpush.bf16.msra.mxu0 %v2144
        %2165 = vmatpush.bf16.msra.mxu0 %v2142
        %2166 = vmatpush.bf16.msra.mxu0 %v2140
        %2167 = vmatmul.bf16.gmra.mxu0 %v2157
        %v2168 = vpop.f32.mrf.mxu0
        %v2169 = vadd.f32 0.0, %v2168
        %v2170 = vpop.f32.mrf.mxu0
        %v2171 = vadd.f32 0.0, %v2170
        %2172 = vdwg.mxu0
        %2173 = vmatpush.bf16.msra.mxu0 0
        %2174 = vmatpush.bf16.msra.mxu0 0
        %2175 = vmatpush.bf16.msra.mxu0 0
        %2176 = vmatpush.bf16.msra.mxu0 0
        %2177 = vmatpush.bf16.msra.mxu0 %v2147
        %2178 = vmatpush.bf16.msra.mxu0 %v2145
        %2179 = vmatpush.bf16.msra.mxu0 %v2143
        %2180 = vmatpush.bf16.msra.mxu0 %v2141
        %2181 = vmatmul.bf16.gmra.mxu0 %v2157
        %v2182 = vpop.f32.mrf.mxu0
        %v2183 = vadd.f32 0.0, %v2182
        %v2184 = vpop.f32.mrf.mxu0
        %v2185 = vadd.f32 0.0, %v2184
        %2186 = vdwg.mxu0
        %v2187 = vadd.f32 %v2022, %v2169
        %v2188 = vadd.f32 %v2036, %v2183
        %v2189 = vadd.f32 %v2024, %v2171
        %v2190 = vadd.f32 %v2038, %v2185
        %2192 = vrot.lane.b32.xlu0 %v2040, 64
        %v2193 = vpop.permute.xlu0 %2192
        %2195 = vrot.lane.b32.xlu0 %v2041, 64
        %v2196 = vpop.permute.xlu0 %2195
        %v2198 = vsel %vm1741, %v2193, 0
        %v2201 = vsel %vm1741, %v2196, 0
        %2203 = vmatpush.bf16.xpose.msra.mxu0 0
        %2204 = vmatpush.bf16.xpose.msra.mxu0 0
        %2205 = vmatpush.bf16.xpose.msra.mxu0 0
        %2206 = vmatpush.bf16.xpose.msra.mxu0 0
        %2207 = vmatpush.bf16.xpose.msra.mxu0 0
        %2208 = vmatpush.bf16.xpose.msra.mxu0 0
        %2209 = vmatpush.bf16.xpose.msra.mxu0 0
        %2210 = vmatpush.bf16.xpose.msra.mxu0 %v2201
        %2211 = vmatmul.bf16.gmra.mxu0 %v2198
        %v2212 = vpop.f32.mrf.mxu0
        %v2213 = vadd.f32 0.0, %v2212
        %v2214 = vpop.f32.mrf.mxu0
        %v2215 = vadd.f32 0.0, %v2214
        %2216 = vdwg.mxu0
        %v2217 = vmul.f32 %v2213, 0.125
        %v2218 = vmul.f32 %v2215, 0.125
        %v2219 = vadd.f32 %v2217, %v1736
        %v2220 = vadd.f32 %v2218, %v1737
        %v2221 = vsel %vm559, %v2219, -inf
        %2222 = vmax.xlane.f32.xlu0 %v2221
        %v2223 = vpop.xlane.xlu0 %2222
        %v2224 = vsel %vm559, %v2220, -inf
        %2225 = vmax.xlane.f32.xlu0 %v2224
        %v2226 = vpop.xlane.xlu0 %2225
        %v2227 = vsub.f32 %v2219, %v2223
        %v2228 = vsub.f32 %v2220, %v2226
        %v2229 = vmul.f32 %v2227, 1.442695
        %v2230 = vpow.pop %v2229
        %v2231 = vmul.f32 %v2228, 1.442695
        %v2232 = vpow.pop %v2231
        %v2233 = vsel %vm559, %v2230, 0.0
        %2234 = vadd.xlane.f32.xlu0 %v2233
        %v2235 = vpop.xlane.xlu0 %2234
        %v2236 = vsel %vm559, %v2232, 0.0
        %2237 = vadd.xlane.f32.xlu0 %v2236
        %v2238 = vpop.xlane.xlu0 %2237
        %v2239 = vrcp.pop %v2235
        %v2240 = vrcp.pop %v2238
        %v2241 = vmul.f32 %v2230, %v2239
        %v2242 = vmul.f32 %v2232, %v2240
        %v2243 = vpack.c.bf16 %v2242, %v2241
        %2245 = vrot.lane.b32.xlu0 %v2042, 64
        %v2246 = vpop.permute.xlu0 %2245
        %v2249 = vsel %vm559, %v2243, 0
        %2251 = vmatpush.bf16.msra.mxu0 0
        %2252 = vmatpush.bf16.msra.mxu0 0
        %2253 = vmatpush.bf16.msra.mxu0 0
        %2254 = vmatpush.bf16.msra.mxu0 0
        %2255 = vmatpush.bf16.msra.mxu0 0
        %2256 = vmatpush.bf16.msra.mxu0 0
        %2257 = vmatpush.bf16.msra.mxu0 0
        %2258 = vmatpush.bf16.msra.mxu0 %v2246
        %2259 = vmatmul.bf16.gmra.mxu0 %v2249
        %v2260 = vpop.f32.mrf.mxu0
        %v2261 = vadd.f32 0.0, %v2260
        %v2262 = vpop.f32.mrf.mxu0
        %v2263 = vadd.f32 0.0, %v2262
        %2264 = vdwg.mxu0
        %v2265 = vpack.c.bf16 %v2263, %v2261
        %v2266 = vld [vmem:[#allocation16 + $0xc0] sm:$0xff]
        %v2267 = vld [vmem:[#allocation16 + $0xc8] sm:$0xff]
        %v2268 = vld [vmem:[#allocation16 + $0xd0] sm:$0xff]
        %v2269 = vld [vmem:[#allocation16 + $0xd8] sm:$0xff]
        %v2270 = vld [vmem:[#allocation16 + $0xe0] sm:$0xff]
        %v2271 = vld [vmem:[#allocation16 + $0xe8] sm:$0xff]
        %v2272 = vld [vmem:[#allocation16 + $0xf0] sm:$0xff]
        %v2273 = vld [vmem:[#allocation16 + $0xf8] sm:$0xff]
        %v2282 = vunpack.c.l.b16 %v2266
        %v2283 = vunpack.c.h.b16 %v2266
        %v2284 = vunpack.c.l.b16 %v2267
        %v2285 = vunpack.c.h.b16 %v2267
        %v2286 = vunpack.c.l.b16 %v2268
        %v2287 = vunpack.c.h.b16 %v2268
        %v2288 = vunpack.c.l.b16 %v2269
        %v2289 = vunpack.c.h.b16 %v2269
        %v2290 = vunpack.c.l.b16 %v2270
        %v2291 = vunpack.c.h.b16 %v2270
        %v2292 = vunpack.c.l.b16 %v2271
        %v2293 = vunpack.c.h.b16 %v2271
        %v2294 = vunpack.c.l.b16 %v2272
        %v2295 = vunpack.c.h.b16 %v2272
        %v2296 = vunpack.c.l.b16 %v2273
        %v2297 = vunpack.c.h.b16 %v2273
        %v2298 = vpack.c.b16 %v2284, %v2282
        %v2299 = vpack.c.b16 %v2285, %v2283
        %v2300 = vpack.c.b16 %v2288, %v2286
        %v2301 = vpack.c.b16 %v2289, %v2287
        %v2302 = vpack.c.b16 %v2292, %v2290
        %v2303 = vpack.c.b16 %v2293, %v2291
        %v2304 = vpack.c.b16 %v2296, %v2294
        %v2305 = vpack.c.b16 %v2297, %v2295
        %v2315 = vsel %vm1741, %v2265, 0
        %2317 = vmatpush.bf16.msra.mxu0 0
        %2318 = vmatpush.bf16.msra.mxu0 0
        %2319 = vmatpush.bf16.msra.mxu0 0
        %2320 = vmatpush.bf16.msra.mxu0 0
        %2321 = vmatpush.bf16.msra.mxu0 %v2304
        %2322 = vmatpush.bf16.msra.mxu0 %v2302
        %2323 = vmatpush.bf16.msra.mxu0 %v2300
        %2324 = vmatpush.bf16.msra.mxu0 %v2298
        %2325 = vmatmul.bf16.gmra.mxu0 %v2315
        %v2326 = vpop.f32.mrf.mxu0
        %v2327 = vadd.f32 0.0, %v2326
        %v2328 = vpop.f32.mrf.mxu0
        %v2329 = vadd.f32 0.0, %v2328
        %2330 = vdwg.mxu0
        %2331 = vmatpush.bf16.msra.mxu0 0
        %2332 = vmatpush.bf16.msra.mxu0 0
        %2333 = vmatpush.bf16.msra.mxu0 0
        %2334 = vmatpush.bf16.msra.mxu0 0
        %2335 = vmatpush.bf16.msra.mxu0 %v2305
        %2336 = vmatpush.bf16.msra.mxu0 %v2303
        %2337 = vmatpush.bf16.msra.mxu0 %v2301
        %2338 = vmatpush.bf16.msra.mxu0 %v2299
        %2339 = vmatmul.bf16.gmra.mxu0 %v2315
        %v2340 = vpop.f32.mrf.mxu0
        %v2341 = vadd.f32 0.0, %v2340
        %v2342 = vpop.f32.mrf.mxu0
        %v2343 = vadd.f32 0.0, %v2342
        %2344 = vdwg.mxu0
        %v2345 = vadd.f32 %v2187, %v2327
        %v2346 = vadd.f32 %v2188, %v2341
        %v2347 = vadd.f32 %v2189, %v2329
        %v2348 = vadd.f32 %v2190, %v2343
        %v2349 = vld [vmem:[#allocation17] sm:$0x3]
        %v2351 = vperm.slane %v2349, 0
        %v2352 = vperm.slane %v2349, 1
        %v2355 = vadd.f32 %v2345, %v2351
        %v2356 = vadd.f32 %v2346, %v2352
        %v2357 = vadd.f32 %v2347, %v2351
        %v2358 = vadd.f32 %v2348, %v2352
        %2359 = vst [vmem:[%s551] sm:$0xff] %v2355
        %2360 = vst [vmem:[%s551 + $0x8] sm:$0xff] %v2356
        %2361 = vst [vmem:[%s551 + $0x10] sm:$0xff] %v2357
        %2362 = vst [vmem:[%s551 + $0x18] sm:$0xff] %v2358
        %s2363 = sand.u32 %s277, 1
        %s2364 = scalar_lea.sflag [#allocation4], %s2363
        %s2365 = sand.u32 %s277, 1
        %s2366 = smul.addr %s2365, 32
        %s2367 = scalar_lea.vmem [#allocation19], %s2366
        // Predicated region
        $region105: #{_lambda_.1} parent=63 // pred_check
          %p2368 = pneg %p287
        $region106: #{_lambda_.1} parent=63 // pred_check_branch
          %2370 = sbr.rel (%p2368) target = $region108
        $region107: #{_lambda_.1} parent=63 // pred_region
          %2372 = vsyncadd %s2364, 0
          %s2373 = smul.addr %s33, 4
          %s2374 = smul.addr %s2373, 8
          %s2375 = scalar_lea.hbm %s11, %s2374
          %s2376 = sshll.u32 %s2367, 4
          %s2377 = int_to_ptr.vmem [resolvable:$true] %s2376
          %s2378 = sshll.u32 %s2375, 4
          %s2379 = int_to_ptr.hbm [resolvable:$true] %s2378
          %2384 = dma.vmem_to_hbm [thread:$0]  %s2377, 512, %s2379, %s2364, 256, 256, 16
        $region108: #{_lambda_.1} parent=63 // pred_fallthru
          _
      $region64: #{_lambda_.1} parent=5 // pred_fallthru
        _
      %p2385 = scmp.le.s32.totalorder 2, %s28
      // Predicated region
      $region109: #{_lambda_.1} parent=5 // pred_check
        %p2386 = pneg %p2385
      $region110: #{_lambda_.1} parent=5 // pred_check_branch
        %2388 = sbr.rel (%p2386) target = $region112
      $region111: #{_lambda_.1} parent=5 // pred_region
        %s2389 = ssub.s32 %s28, 2
        // Predicated region
        $region113: #{_lambda_.1} parent=111 // pred_check
          %p2390 = pneg %p293
        $region114: #{_lambda_.1} parent=111 // pred_check_branch
          %2392 = sbr.rel (%p2390) target = $region116
        $region115: #{_lambda_.1} parent=111 // pred_region
          %s2393 = sand.u32 %s278, 1
          %s2394 = scalar_lea.sflag [#allocation4], %s2393
          %s2395 = sand.u32 %s278, 1
          %s2396 = smul.addr %s2395, 32
          %s2397 = scalar_lea.vmem [#allocation19], %s2396
          %2399 = dma.done %s2394, 512
        $region116: #{_lambda_.1} parent=111 // pred_fallthru
          _
      $region112: #{_lambda_.1} parent=5 // pred_fallthru
        _
    $region6: #{_lambda_.1} parent=1 // loop_footer
      %s32 = sadd.s32 1, %s28
    $region7: #{_lambda_.1} parent=1 // loop_footer_branch
      %27 = sbr.rel target = $region3
    $region8: #{_lambda_.1} parent=1 // loop_exit
      _
    %2400 = vsyncpa [#allocation3], 1
    %s2401 = scalar_lea.sflag [#allocation3], 1
    %2402 = vsyncpa %s2401, 1
    %2403 = vsyncpa [#allocation6], 1
    %2404 = vsyncpa [#allocation9], 1
    %2405 = vsyncpa [#allocation12], 1
    %2406 = vsyncpa [#allocation15], 1
    %2407 = vsyncpa [#allocation18], 1
    %2408 = vsyncpa [#allocation4], 1
    %s2409 = scalar_lea.sflag [#allocation4], 1
    %2410 = vsyncpa %s2409, 1

</llo_original>
